<compile_context>
chip_gen: v6e
topology: v6e:2x2x1
jax: 0.10.0
libtpu: 0.0.40
codegen_flags: <defaults>
</compile_context>

<pallas_src>
import functools

import jax
import jax.numpy as jnp
import numpy as np
from jax import lax
from jax.experimental import pallas as pl
from jax.experimental.pallas import tpu as pltpu


def lsm_kernel(x_ref, winT_ref, wrecT_ref, bcat_ref, wlsm_in_ref,   # inputs
               spk_rec_ref, wlsm_out_ref,                           # outputs
               curr_scr, post_scr, pre_scr,                         # scratch
               *, T, B, alpha, beta, th, delta):
    N = wrecT_ref.shape[0]

    # (1) All T input projections in ONE MXU call, fused bias added once.
    #     x_ref is (T*B, IN), winT_ref is (IN, N), bcat_ref is (1, N).
    curr_scr[...] = (
        jnp.dot(x_ref[...], winT_ref[...], preferred_element_type=jnp.float32)
        + bcat_ref[...])

    # (2) Serial recurrence.  Loop body: one tiny (B,N)x(N,N) matmul + a few
    #     VPU ops + three lane-dense stores.  No STDP work in here anymore.
    def step(t, carry):
        spk_prev, syn_prev, mem_prev = carry

        base = pl.multiple_of(t * B, B)
        curr = curr_scr[pl.ds(base, B), :]                    # (B, N), bias incl.
        # wrecT read from VMEM inside the dot (not hoisted -> low vreg pressure)
        rec = jnp.dot(spk_prev, wrecT_ref[...],
                      preferred_element_type=jnp.float32)

        reset = (mem_prev > th).astype(jnp.float32)
        syn_new = alpha * syn_prev + curr + rec
        mem_new = beta * mem_prev + syn_new - reset * th
        spk_new = (mem_new > th).astype(jnp.float32)

        spk_rec_ref[t] = spk_new                              # lane-dense (B, N)

        # Record batch-0 post/pre spike rows for the post-loop STDP matmul.
        # pre_scr[0] gets the all-zero initial spike row, which exactly encodes
        # the original `step > 0` gate.
        post_scr[pl.ds(t, 1), :] = spk_new[0:1, :]
        pre_scr[pl.ds(t, 1), :] = spk_prev[0:1, :]

        return spk_new, syn_new, mem_new

    zeros = jnp.zeros((B, N), jnp.float32)
    # Short, fixed trip count with a hard serial dependency -> fully unroll.
    lax.fori_loop(0, T, step, (zeros, zeros, zeros), unroll=True)

    # (3) Post-loop STDP: ONE MXU coincidence matmul + one masked clipped update.
    #     counts[post, pre] = sum_t post_scr[t, post] * pre_scr[t, pre]
    counts = lax.dot_general(
        post_scr[...], pre_scr[...],
        dimension_numbers=(((0,), (0,)), ((), ())),
        preferred_element_type=jnp.float32)                   # (N, N)
    w = wlsm_in_ref[...]
    wlsm_out_ref[...] = jnp.where(counts > 0.5,
                                  jnp.clip(w + counts * delta, -1.0, 1.0),
                                  w)


def lsm_forward(x, winT, b1, wrecT, brec, wlsm, *, alpha=0.9, beta=0.9,
                th=20.0, tau_pos=20.0, tau_neg=20.0):
    """x: (T, B, IN); winT: (IN, N); b1/brec: (1, N); wrecT/wlsm: (N, N)."""
    T, B, IN = x.shape
    N = winT.shape[1]
    # Lane/sublane-dense stores in the kernel rely on these.
    assert B % 8 == 0, f"batch size B={B} must be a multiple of 8"
    assert N % 128 == 0, f"liquid size N={N} must be a multiple of 128"

    # dt in apply_stdp is always (step) - (step - 1) = 1
    delta = float((np.exp(-1.0 / tau_pos) - np.exp(1.0 / tau_neg)) * 0.001)

    bcat = (b1 + brec).reshape(1, N).astype(jnp.float32)   # fused bias
    x2d = x.reshape(T * B, IN)                              # time-batch flattened

    kernel = functools.partial(lsm_kernel, T=T, B=B, alpha=float(alpha),
                               beta=float(beta), th=float(th), delta=delta)

    vmem = pltpu.MemorySpace.VMEM
    spk_rec, wlsm_out = pl.pallas_call(
        kernel,
        out_shape=(jax.ShapeDtypeStruct((T, B, N), jnp.float32),
                   jax.ShapeDtypeStruct((N, N), jnp.float32)),
        # Single invocation (no grid): every operand is resident in VMEM; at
        # these sizes total VMEM use is well under 1 MiB on every generation.
        in_specs=[pl.BlockSpec(memory_space=vmem)] * 5,
        out_specs=(pl.BlockSpec(memory_space=vmem),
                   pl.BlockSpec(memory_space=vmem)),
        scratch_shapes=[pltpu.VMEM((T * B, N), jnp.float32),   # precomputed curr
                        pltpu.VMEM((T, N), jnp.float32),       # batch-0 post spikes
                        pltpu.VMEM((T, N), jnp.float32)],      # batch-0 pre spikes
    )(x2d, winT, wrecT, bcat, wlsm)
    return spk_rec, wlsm_out


def lsm_reference(x, winT, b1, wrecT, brec, wlsm, *, alpha=0.9, beta=0.9,
                  th=20.0, tau_pos=20.0, tau_neg=20.0):
    """Pure-JAX reference (lax.scan) with identical semantics.

    b1 + brec are both added into syn every step in the module (fc1 bias +
    recurrent Linear bias), so folding them into one bias is exact.
    """
    T, B, IN = x.shape
    N = winT.shape[1]
    delta = float((np.exp(-1.0 / tau_pos) - np.exp(1.0 / tau_neg)) * 0.001)
    bcat = b1 + brec

    def step(carry, x_t):
        spk, syn, mem, W, t = carry
        curr = x_t @ winT + bcat
        rec = spk @ wrecT
        reset = (mem > th).astype(jnp.float32)
        syn_n = alpha * syn + curr + rec
        mem_n = beta * mem + syn_n - reset * th
        spk_n = (mem_n > th).astype(jnp.float32)
        hit = (spk_n[0][:, None] > 0.5) & (spk[0][None, :] > 0.5)
        W_n = jnp.where((t > 0) & hit, jnp.clip(W + delta, -1.0, 1.0), W)
        return (spk_n, syn_n, mem_n, W_n, t + 1), spk_n

    z = jnp.zeros((B, N), jnp.float32)
    (_, _, _, W_fin, _), spk_rec = jax.lax.scan(
        step, (z, z, z, wlsm, jnp.int32(0)), x)
    return spk_rec, W_fin


if __name__ == "__main__":
    T, B, IN, N = 8, 8, 32, 128   # num_steps, batch, in_sz, liquid size

    key = jax.random.PRNGKey(0)
    k_x, k_win, k_b1, k_wrec, k_brec, k_wlsm = jax.random.split(key, 6)

    x = jax.random.normal(k_x, (T, B, IN), dtype=jnp.float32)
    Win = jax.random.normal(k_win, (N, IN), dtype=jnp.float32)         # fc1.weight (N, in_sz)
    b1 = 0.1 * jax.random.normal(k_b1, (1, N), dtype=jnp.float32)      # fc1.bias
    Wrec = 0.2 * jax.random.normal(k_wrec, (N, N), dtype=jnp.float32)  # RSynaptic recurrent weight
    brec = 0.1 * jax.random.normal(k_brec, (1, N), dtype=jnp.float32)  # RSynaptic recurrent bias
    Wlsm = jax.random.uniform(k_wlsm, (N, N), dtype=jnp.float32,
                              minval=-0.5, maxval=0.5)

    winT = Win.T
    wrecT = Wrec.T

    spk_ref, wlsm_ref = lsm_reference(x, winT, b1, wrecT, brec, Wlsm,
                                      alpha=0.9, beta=0.9, th=20.0,
                                      tau_pos=20.0, tau_neg=20.0)
    spk_ref = jax.block_until_ready(spk_ref)
    wlsm_ref = jax.block_until_ready(wlsm_ref)

    spk_rec, wlsm_out = lsm_forward(x, winT, b1, wrecT, brec, Wlsm,
                                    alpha=0.9, beta=0.9, th=20.0,
                                    tau_pos=20.0, tau_neg=20.0)
    spk_rec = jax.block_until_ready(spk_rec)
    wlsm_out = jax.block_until_ready(wlsm_out)

    assert spk_rec.shape == (T, B, N)
    np.testing.assert_allclose(np.asarray(spk_rec), np.asarray(spk_ref), atol=1e-5)
    np.testing.assert_allclose(np.asarray(wlsm_out), np.asarray(wlsm_ref), atol=1e-5)

    print("KERNEL_OK")
</pallas_src>

<mosaic_0001>
module attributes {stable_mosaic.version = 11 : i64} {
  func.func @lsm_kernel(%arg0: memref<64x32xf32, #tpu.memory_space<vmem>>, %arg1: memref<32x128xf32, #tpu.memory_space<vmem>>, %arg2: memref<128x128xf32, #tpu.memory_space<vmem>>, %arg3: memref<1x128xf32, #tpu.memory_space<vmem>>, %arg4: memref<128x128xf32, #tpu.memory_space<vmem>>, %arg5: memref<8x8x128xf32, #tpu.memory_space<vmem>>, %arg6: memref<128x128xf32, #tpu.memory_space<vmem>>, %arg7: memref<64x128xf32, #tpu.memory_space<vmem>>, %arg8: memref<8x128xf32, #tpu.memory_space<vmem>>, %arg9: memref<8x128xf32, #tpu.memory_space<vmem>>) attributes {dimension_semantics = [], scalar_prefetch = 0 : i64, scratch_operands = 3 : i64, tpu.core_type = #tpu.core_type<tc>} {
    %c0 = arith.constant 0 : index
    %c0_0 = arith.constant 0 : index
    %0 = vector.load %arg0[%c0, %c0_0] : memref<64x32xf32, #tpu.memory_space<vmem>>, vector<64x32xf32>
    %c0_1 = arith.constant 0 : index
    %c0_2 = arith.constant 0 : index
    %1 = vector.load %arg1[%c0_1, %c0_2] : memref<32x128xf32, #tpu.memory_space<vmem>>, vector<32x128xf32>
    %cst = arith.constant dense<0.000000e+00> : vector<64x128xf32>
    %2 = tpu.matmul %0, %1, %cst {dimension_numbers = #tpu.dot_dimension_numbers<[1], [0], [0], [1], [0, 0, 1, 1], [], []>} : vector<64x32xf32>, vector<32x128xf32>, vector<64x128xf32> -> vector<64x128xf32>
    %c0_3 = arith.constant 0 : index
    %c0_4 = arith.constant 0 : index
    %3 = vector.load %arg3[%c0_3, %c0_4] : memref<1x128xf32, #tpu.memory_space<vmem>>, vector<1x128xf32>
    %4 = vector.broadcast %3 : vector<1x128xf32> to vector<64x128xf32>
    %5 = arith.addf %2, %4 : vector<64x128xf32>
    %c0_5 = arith.constant 0 : index
    %c0_6 = arith.constant 0 : index
    %6 = vector.load %arg7[%c0_5, %c0_6] : memref<64x128xf32, #tpu.memory_space<vmem>>, vector<64x128xf32>
    tpu.vector_store %arg7[%c0_5, %c0_6], %5 {strides = array<i32>} : memref<64x128xf32, #tpu.memory_space<vmem>>, vector<64x128xf32>,
    %cst_7 = arith.constant 0.000000e+00 : f32
    %7 = vector.broadcast %cst_7 : f32 to vector<8x128xf32>
    %c0_i32 = arith.constant 0 : i32
    %c8_i32 = arith.constant 8 : i32
    %8 = arith.muli %c0_i32, %c8_i32 : i32
    %9 = tpu.assume_multiple %8, 8 : i32
    %10 = arith.index_cast %9 : i32 to index
    %c0_8 = arith.constant 0 : index
    %11 = vector.load %arg7[%10, %c0_8] : memref<64x128xf32, #tpu.memory_space<vmem>>, vector<8x128xf32>
    %c0_9 = arith.constant 0 : index
    %c0_10 = arith.constant 0 : index
    %12 = vector.load %arg2[%c0_9, %c0_10] : memref<128x128xf32, #tpu.memory_space<vmem>>, vector<128x128xf32>
    %cst_11 = arith.constant dense<0.000000e+00> : vector<8x128xf32>
    %13 = tpu.matmul %7, %12, %cst_11 {dimension_numbers = #tpu.dot_dimension_numbers<[1], [0], [0], [1], [0, 0, 1, 1], [], []>} : vector<8x128xf32>, vector<128x128xf32>, vector<8x128xf32> -> vector<8x128xf32>
    %cst_12 = arith.constant 2.000000e+01 : f32
    %14 = vector.broadcast %cst_12 : f32 to vector<8x128xf32>
    %15 = arith.cmpf ogt, %7, %14 : vector<8x128xf32>
    %16 = arith.extui %15 : vector<8x128xi1> to vector<8x128xi32>
    %17 = arith.sitofp %16 : vector<8x128xi32> to vector<8x128xf32>
    %cst_13 = arith.constant 0.899999976 : f32
    %18 = vector.broadcast %cst_13 : f32 to vector<8x128xf32>
    %19 = arith.mulf %18, %7 : vector<8x128xf32>
    %20 = arith.addf %19, %11 : vector<8x128xf32>
    %21 = arith.addf %20, %13 : vector<8x128xf32>
    %cst_14 = arith.constant 0.899999976 : f32
    %22 = vector.broadcast %cst_14 : f32 to vector<8x128xf32>
    %23 = arith.mulf %22, %7 : vector<8x128xf32>
    %24 = arith.addf %23, %21 : vector<8x128xf32>
    %cst_15 = arith.constant 2.000000e+01 : f32
    %25 = vector.broadcast %cst_15 : f32 to vector<8x128xf32>
    %26 = arith.mulf %17, %25 : vector<8x128xf32>
    %27 = arith.subf %24, %26 : vector<8x128xf32>
    %cst_16 = arith.constant 2.000000e+01 : f32
    %28 = vector.broadcast %cst_16 : f32 to vector<8x128xf32>
    %29 = arith.cmpf ogt, %27, %28 : vector<8x128xf32>
    %30 = arith.extui %29 : vector<8x128xi1> to vector<8x128xi32>
    %31 = arith.sitofp %30 : vector<8x128xi32> to vector<8x128xf32>
    %32 = arith.index_cast %c0_i32 : i32 to index
    %c0_17 = arith.constant 0 : index
    %c0_18 = arith.constant 0 : index
    %33 = vector.load %arg5[%32, %c0_17, %c0_18] : memref<8x8x128xf32, #tpu.memory_space<vmem>>, vector<1x8x128xf32>
    %34 = vector.shape_cast %33 : vector<1x8x128xf32> to vector<8x128xf32>
    %35 = vector.shape_cast %31 : vector<8x128xf32> to vector<1x8x128xf32>
    tpu.vector_store %arg5[%32, %c0_17, %c0_18], %35 {strides = array<i32>} : memref<8x8x128xf32, #tpu.memory_space<vmem>>, vector<1x8x128xf32>,
    %36 = vector.extract_strided_slice %31 {offsets = [0, 0], sizes = [1, 128], strides = [1, 1]} : vector<8x128xf32> to vector<1x128xf32>
    %37 = arith.index_cast %c0_i32 : i32 to index
    %c0_19 = arith.constant 0 : index
    %38 = vector.load %arg8[%37, %c0_19] : memref<8x128xf32, #tpu.memory_space<vmem>>, vector<1x128xf32>
    tpu.vector_store %arg8[%37, %c0_19], %36 {strides = array<i32>} : memref<8x128xf32, #tpu.memory_space<vmem>>, vector<1x128xf32>,
    %39 = vector.extract_strided_slice %7 {offsets = [0, 0], sizes = [1, 128], strides = [1, 1]} : vector<8x128xf32> to vector<1x128xf32>
    %40 = arith.index_cast %c0_i32 : i32 to index
    %c0_20 = arith.constant 0 : index
    %41 = vector.load %arg9[%40, %c0_20] : memref<8x128xf32, #tpu.memory_space<vmem>>, vector<1x128xf32>
    tpu.vector_store %arg9[%40, %c0_20], %39 {strides = array<i32>} : memref<8x128xf32, #tpu.memory_space<vmem>>, vector<1x128xf32>,
    %c1_i32 = arith.constant 1 : i32
    %c8_i32_21 = arith.constant 8 : i32
    %42 = arith.muli %c1_i32, %c8_i32_21 : i32
    %43 = tpu.assume_multiple %42, 8 : i32
    %44 = arith.index_cast %43 : i32 to index
    %c0_22 = arith.constant 0 : index
    %45 = vector.load %arg7[%44, %c0_22] : memref<64x128xf32, #tpu.memory_space<vmem>>, vector<8x128xf32>
    %c0_23 = arith.constant 0 : index
    %c0_24 = arith.constant 0 : index
    %46 = vector.load %arg2[%c0_23, %c0_24] : memref<128x128xf32, #tpu.memory_space<vmem>>, vector<128x128xf32>
    %cst_25 = arith.constant dense<0.000000e+00> : vector<8x128xf32>
    %47 = tpu.matmul %31, %46, %cst_25 {dimension_numbers = #tpu.dot_dimension_numbers<[1], [0], [0], [1], [0, 0, 1, 1], [], []>} : vector<8x128xf32>, vector<128x128xf32>, vector<8x128xf32> -> vector<8x128xf32>
    %cst_26 = arith.constant 2.000000e+01 : f32
    %48 = vector.broadcast %cst_26 : f32 to vector<8x128xf32>
    %49 = arith.cmpf ogt, %27, %48 : vector<8x128xf32>
    %50 = arith.extui %49 : vector<8x128xi1> to vector<8x128xi32>
    %51 = arith.sitofp %50 : vector<8x128xi32> to vector<8x128xf32>
    %cst_27 = arith.constant 0.899999976 : f32
    %52 = vector.broadcast %cst_27 : f32 to vector<8x128xf32>
    %53 = arith.mulf %52, %21 : vector<8x128xf32>
    %54 = arith.addf %53, %45 : vector<8x128xf32>
    %55 = arith.addf %54, %47 : vector<8x128xf32>
    %cst_28 = arith.constant 0.899999976 : f32
    %56 = vector.broadcast %cst_28 : f32 to vector<8x128xf32>
    %57 = arith.mulf %56, %27 : vector<8x128xf32>
    %58 = arith.addf %57, %55 : vector<8x128xf32>
    %cst_29 = arith.constant 2.000000e+01 : f32
    %59 = vector.broadcast %cst_29 : f32 to vector<8x128xf32>
    %60 = arith.mulf %51, %59 : vector<8x128xf32>
    %61 = arith.subf %58, %60 : vector<8x128xf32>
    %cst_30 = arith.constant 2.000000e+01 : f32
    %62 = vector.broadcast %cst_30 : f32 to vector<8x128xf32>
    %63 = arith.cmpf ogt, %61, %62 : vector<8x128xf32>
    %64 = arith.extui %63 : vector<8x128xi1> to vector<8x128xi32>
    %65 = arith.sitofp %64 : vector<8x128xi32> to vector<8x128xf32>
    %66 = arith.index_cast %c1_i32 : i32 to index
    %c0_31 = arith.constant 0 : index
    %c0_32 = arith.constant 0 : index
    %67 = vector.load %arg5[%66, %c0_31, %c0_32] : memref<8x8x128xf32, #tpu.memory_space<vmem>>, vector<1x8x128xf32>
    %68 = vector.shape_cast %67 : vector<1x8x128xf32> to vector<8x128xf32>
    %69 = vector.shape_cast %65 : vector<8x128xf32> to vector<1x8x128xf32>
    tpu.vector_store %arg5[%66, %c0_31, %c0_32], %69 {strides = array<i32>} : memref<8x8x128xf32, #tpu.memory_space<vmem>>, vector<1x8x128xf32>,
    %70 = vector.extract_strided_slice %65 {offsets = [0, 0], sizes = [1, 128], strides = [1, 1]} : vector<8x128xf32> to vector<1x128xf32>
    %71 = arith.index_cast %c1_i32 : i32 to index
    %c0_33 = arith.constant 0 : index
    %72 = vector.load %arg8[%71, %c0_33] : memref<8x128xf32, #tpu.memory_space<vmem>>, vector<1x128xf32>
    tpu.vector_store %arg8[%71, %c0_33], %70 {strides = array<i32>} : memref<8x128xf32, #tpu.memory_space<vmem>>, vector<1x128xf32>,
    %73 = vector.extract_strided_slice %31 {offsets = [0, 0], sizes = [1, 128], strides = [1, 1]} : vector<8x128xf32> to vector<1x128xf32>
    %74 = arith.index_cast %c1_i32 : i32 to index
    %c0_34 = arith.constant 0 : index
    %75 = vector.load %arg9[%74, %c0_34] : memref<8x128xf32, #tpu.memory_space<vmem>>, vector<1x128xf32>
    tpu.vector_store %arg9[%74, %c0_34], %73 {strides = array<i32>} : memref<8x128xf32, #tpu.memory_space<vmem>>, vector<1x128xf32>,
    %c2_i32 = arith.constant 2 : i32
    %c8_i32_35 = arith.constant 8 : i32
    %76 = arith.muli %c2_i32, %c8_i32_35 : i32
    %77 = tpu.assume_multiple %76, 8 : i32
    %78 = arith.index_cast %77 : i32 to index
    %c0_36 = arith.constant 0 : index
    %79 = vector.load %arg7[%78, %c0_36] : memref<64x128xf32, #tpu.memory_space<vmem>>, vector<8x128xf32>
    %c0_37 = arith.constant 0 : index
    %c0_38 = arith.constant 0 : index
    %80 = vector.load %arg2[%c0_37, %c0_38] : memref<128x128xf32, #tpu.memory_space<vmem>>, vector<128x128xf32>
    %cst_39 = arith.constant dense<0.000000e+00> : vector<8x128xf32>
    %81 = tpu.matmul %65, %80, %cst_39 {dimension_numbers = #tpu.dot_dimension_numbers<[1], [0], [0], [1], [0, 0, 1, 1], [], []>} : vector<8x128xf32>, vector<128x128xf32>, vector<8x128xf32> -> vector<8x128xf32>
    %cst_40 = arith.constant 2.000000e+01 : f32
    %82 = vector.broadcast %cst_40 : f32 to vector<8x128xf32>
    %83 = arith.cmpf ogt, %61, %82 : vector<8x128xf32>
    %84 = arith.extui %83 : vector<8x128xi1> to vector<8x128xi32>
    %85 = arith.sitofp %84 : vector<8x128xi32> to vector<8x128xf32>
    %cst_41 = arith.constant 0.899999976 : f32
    %86 = vector.broadcast %cst_41 : f32 to vector<8x128xf32>
    %87 = arith.mulf %86, %55 : vector<8x128xf32>
    %88 = arith.addf %87, %79 : vector<8x128xf32>
    %89 = arith.addf %88, %81 : vector<8x128xf32>
    %cst_42 = arith.constant 0.899999976 : f32
    %90 = vector.broadcast %cst_42 : f32 to vector<8x128xf32>
    %91 = arith.mulf %90, %61 : vector<8x128xf32>
    %92 = arith.addf %91, %89 : vector<8x128xf32>
    %cst_43 = arith.constant 2.000000e+01 : f32
    %93 = vector.broadcast %cst_43 : f32 to vector<8x128xf32>
    %94 = arith.mulf %85, %93 : vector<8x128xf32>
    %95 = arith.subf %92, %94 : vector<8x128xf32>
    %cst_44 = arith.constant 2.000000e+01 : f32
    %96 = vector.broadcast %cst_44 : f32 to vector<8x128xf32>
    %97 = arith.cmpf ogt, %95, %96 : vector<8x128xf32>
    %98 = arith.extui %97 : vector<8x128xi1> to vector<8x128xi32>
    %99 = arith.sitofp %98 : vector<8x128xi32> to vector<8x128xf32>
    %100 = arith.index_cast %c2_i32 : i32 to index
    %c0_45 = arith.constant 0 : index
    %c0_46 = arith.constant 0 : index
    %101 = vector.load %arg5[%100, %c0_45, %c0_46] : memref<8x8x128xf32, #tpu.memory_space<vmem>>, vector<1x8x128xf32>
    %102 = vector.shape_cast %101 : vector<1x8x128xf32> to vector<8x128xf32>
    %103 = vector.shape_cast %99 : vector<8x128xf32> to vector<1x8x128xf32>
    tpu.vector_store %arg5[%100, %c0_45, %c0_46], %103 {strides = array<i32>} : memref<8x8x128xf32, #tpu.memory_space<vmem>>, vector<1x8x128xf32>,
    %104 = vector.extract_strided_slice %99 {offsets = [0, 0], sizes = [1, 128], strides = [1, 1]} : vector<8x128xf32> to vector<1x128xf32>
    %105 = arith.index_cast %c2_i32 : i32 to index
    %c0_47 = arith.constant 0 : index
    %106 = vector.load %arg8[%105, %c0_47] : memref<8x128xf32, #tpu.memory_space<vmem>>, vector<1x128xf32>
    tpu.vector_store %arg8[%105, %c0_47], %104 {strides = array<i32>} : memref<8x128xf32, #tpu.memory_space<vmem>>, vector<1x128xf32>,
    %107 = vector.extract_strided_slice %65 {offsets = [0, 0], sizes = [1, 128], strides = [1, 1]} : vector<8x128xf32> to vector<1x128xf32>
    %108 = arith.index_cast %c2_i32 : i32 to index
    %c0_48 = arith.constant 0 : index
    %109 = vector.load %arg9[%108, %c0_48] : memref<8x128xf32, #tpu.memory_space<vmem>>, vector<1x128xf32>
    tpu.vector_store %arg9[%108, %c0_48], %107 {strides = array<i32>} : memref<8x128xf32, #tpu.memory_space<vmem>>, vector<1x128xf32>,
    %c3_i32 = arith.constant 3 : i32
    %c8_i32_49 = arith.constant 8 : i32
    %110 = arith.muli %c3_i32, %c8_i32_49 : i32
    %111 = tpu.assume_multiple %110, 8 : i32
    %112 = arith.index_cast %111 : i32 to index
    %c0_50 = arith.constant 0 : index
    %113 = vector.load %arg7[%112, %c0_50] : memref<64x128xf32, #tpu.memory_space<vmem>>, vector<8x128xf32>
    %c0_51 = arith.constant 0 : index
    %c0_52 = arith.constant 0 : index
    %114 = vector.load %arg2[%c0_51, %c0_52] : memref<128x128xf32, #tpu.memory_space<vmem>>, vector<128x128xf32>
    %cst_53 = arith.constant dense<0.000000e+00> : vector<8x128xf32>
    %115 = tpu.matmul %99, %114, %cst_53 {dimension_numbers = #tpu.dot_dimension_numbers<[1], [0], [0], [1], [0, 0, 1, 1], [], []>} : vector<8x128xf32>, vector<128x128xf32>, vector<8x128xf32> -> vector<8x128xf32>
    %cst_54 = arith.constant 2.000000e+01 : f32
    %116 = vector.broadcast %cst_54 : f32 to vector<8x128xf32>
    %117 = arith.cmpf ogt, %95, %116 : vector<8x128xf32>
    %118 = arith.extui %117 : vector<8x128xi1> to vector<8x128xi32>
    %119 = arith.sitofp %118 : vector<8x128xi32> to vector<8x128xf32>
    %cst_55 = arith.constant 0.899999976 : f32
    %120 = vector.broadcast %cst_55 : f32 to vector<8x128xf32>
    %121 = arith.mulf %120, %89 : vector<8x128xf32>
    %122 = arith.addf %121, %113 : vector<8x128xf32>
    %123 = arith.addf %122, %115 : vector<8x128xf32>
    %cst_56 = arith.constant 0.899999976 : f32
    %124 = vector.broadcast %cst_56 : f32 to vector<8x128xf32>
    %125 = arith.mulf %124, %95 : vector<8x128xf32>
    %126 = arith.addf %125, %123 : vector<8x128xf32>
    %cst_57 = arith.constant 2.000000e+01 : f32
    %127 = vector.broadcast %cst_57 : f32 to vector<8x128xf32>
    %128 = arith.mulf %119, %127 : vector<8x128xf32>
    %129 = arith.subf %126, %128 : vector<8x128xf32>
    %cst_58 = arith.constant 2.000000e+01 : f32
    %130 = vector.broadcast %cst_58 : f32 to vector<8x128xf32>
    %131 = arith.cmpf ogt, %129, %130 : vector<8x128xf32>
    %132 = arith.extui %131 : vector<8x128xi1> to vector<8x128xi32>
    %133 = arith.sitofp %132 : vector<8x128xi32> to vector<8x128xf32>
    %134 = arith.index_cast %c3_i32 : i32 to index
    %c0_59 = arith.constant 0 : index
    %c0_60 = arith.constant 0 : index
    %135 = vector.load %arg5[%134, %c0_59, %c0_60] : memref<8x8x128xf32, #tpu.memory_space<vmem>>, vector<1x8x128xf32>
    %136 = vector.shape_cast %135 : vector<1x8x128xf32> to vector<8x128xf32>
    %137 = vector.shape_cast %133 : vector<8x128xf32> to vector<1x8x128xf32>
    tpu.vector_store %arg5[%134, %c0_59, %c0_60], %137 {strides = array<i32>} : memref<8x8x128xf32, #tpu.memory_space<vmem>>, vector<1x8x128xf32>,
    %138 = vector.extract_strided_slice %133 {offsets = [0, 0], sizes = [1, 128], strides = [1, 1]} : vector<8x128xf32> to vector<1x128xf32>
    %139 = arith.index_cast %c3_i32 : i32 to index
    %c0_61 = arith.constant 0 : index
    %140 = vector.load %arg8[%139, %c0_61] : memref<8x128xf32, #tpu.memory_space<vmem>>, vector<1x128xf32>
    tpu.vector_store %arg8[%139, %c0_61], %138 {strides = array<i32>} : memref<8x128xf32, #tpu.memory_space<vmem>>, vector<1x128xf32>,
    %141 = vector.extract_strided_slice %99 {offsets = [0, 0], sizes = [1, 128], strides = [1, 1]} : vector<8x128xf32> to vector<1x128xf32>
    %142 = arith.index_cast %c3_i32 : i32 to index
    %c0_62 = arith.constant 0 : index
    %143 = vector.load %arg9[%142, %c0_62] : memref<8x128xf32, #tpu.memory_space<vmem>>, vector<1x128xf32>
    tpu.vector_store %arg9[%142, %c0_62], %141 {strides = array<i32>} : memref<8x128xf32, #tpu.memory_space<vmem>>, vector<1x128xf32>,
    %c4_i32 = arith.constant 4 : i32
    %c8_i32_63 = arith.constant 8 : i32
    %144 = arith.muli %c4_i32, %c8_i32_63 : i32
    %145 = tpu.assume_multiple %144, 8 : i32
    %146 = arith.index_cast %145 : i32 to index
    %c0_64 = arith.constant 0 : index
    %147 = vector.load %arg7[%146, %c0_64] : memref<64x128xf32, #tpu.memory_space<vmem>>, vector<8x128xf32>
    %c0_65 = arith.constant 0 : index
    %c0_66 = arith.constant 0 : index
    %148 = vector.load %arg2[%c0_65, %c0_66] : memref<128x128xf32, #tpu.memory_space<vmem>>, vector<128x128xf32>
    %cst_67 = arith.constant dense<0.000000e+00> : vector<8x128xf32>
    %149 = tpu.matmul %133, %148, %cst_67 {dimension_numbers = #tpu.dot_dimension_numbers<[1], [0], [0], [1], [0, 0, 1, 1], [], []>} : vector<8x128xf32>, vector<128x128xf32>, vector<8x128xf32> -> vector<8x128xf32>
    %cst_68 = arith.constant 2.000000e+01 : f32
    %150 = vector.broadcast %cst_68 : f32 to vector<8x128xf32>
    %151 = arith.cmpf ogt, %129, %150 : vector<8x128xf32>
    %152 = arith.extui %151 : vector<8x128xi1> to vector<8x128xi32>
    %153 = arith.sitofp %152 : vector<8x128xi32> to vector<8x128xf32>
    %cst_69 = arith.constant 0.899999976 : f32
    %154 = vector.broadcast %cst_69 : f32 to vector<8x128xf32>
    %155 = arith.mulf %154, %123 : vector<8x128xf32>
    %156 = arith.addf %155, %147 : vector<8x128xf32>
    %157 = arith.addf %156, %149 : vector<8x128xf32>
    %cst_70 = arith.constant 0.899999976 : f32
    %158 = vector.broadcast %cst_70 : f32 to vector<8x128xf32>
    %159 = arith.mulf %158, %129 : vector<8x128xf32>
    %160 = arith.addf %159, %157 : vector<8x128xf32>
    %cst_71 = arith.constant 2.000000e+01 : f32
    %161 = vector.broadcast %cst_71 : f32 to vector<8x128xf32>
    %162 = arith.mulf %153, %161 : vector<8x128xf32>
    %163 = arith.subf %160, %162 : vector<8x128xf32>
    %cst_72 = arith.constant 2.000000e+01 : f32
    %164 = vector.broadcast %cst_72 : f32 to vector<8x128xf32>
    %165 = arith.cmpf ogt, %163, %164 : vector<8x128xf32>
    %166 = arith.extui %165 : vector<8x128xi1> to vector<8x128xi32>
    %167 = arith.sitofp %166 : vector<8x128xi32> to vector<8x128xf32>
    %168 = arith.index_cast %c4_i32 : i32 to index
    %c0_73 = arith.constant 0 : index
    %c0_74 = arith.constant 0 : index
    %169 = vector.load %arg5[%168, %c0_73, %c0_74] : memref<8x8x128xf32, #tpu.memory_space<vmem>>, vector<1x8x128xf32>
    %170 = vector.shape_cast %169 : vector<1x8x128xf32> to vector<8x128xf32>
    %171 = vector.shape_cast %167 : vector<8x128xf32> to vector<1x8x128xf32>
    tpu.vector_store %arg5[%168, %c0_73, %c0_74], %171 {strides = array<i32>} : memref<8x8x128xf32, #tpu.memory_space<vmem>>, vector<1x8x128xf32>,
    %172 = vector.extract_strided_slice %167 {offsets = [0, 0], sizes = [1, 128], strides = [1, 1]} : vector<8x128xf32> to vector<1x128xf32>
    %173 = arith.index_cast %c4_i32 : i32 to index
    %c0_75 = arith.constant 0 : index
    %174 = vector.load %arg8[%173, %c0_75] : memref<8x128xf32, #tpu.memory_space<vmem>>, vector<1x128xf32>
    tpu.vector_store %arg8[%173, %c0_75], %172 {strides = array<i32>} : memref<8x128xf32, #tpu.memory_space<vmem>>, vector<1x128xf32>,
    %175 = vector.extract_strided_slice %133 {offsets = [0, 0], sizes = [1, 128], strides = [1, 1]} : vector<8x128xf32> to vector<1x128xf32>
    %176 = arith.index_cast %c4_i32 : i32 to index
    %c0_76 = arith.constant 0 : index
    %177 = vector.load %arg9[%176, %c0_76] : memref<8x128xf32, #tpu.memory_space<vmem>>, vector<1x128xf32>
    tpu.vector_store %arg9[%176, %c0_76], %175 {strides = array<i32>} : memref<8x128xf32, #tpu.memory_space<vmem>>, vector<1x128xf32>,
    %c5_i32 = arith.constant 5 : i32
    %c8_i32_77 = arith.constant 8 : i32
    %178 = arith.muli %c5_i32, %c8_i32_77 : i32
    %179 = tpu.assume_multiple %178, 8 : i32
    %180 = arith.index_cast %179 : i32 to index
    %c0_78 = arith.constant 0 : index
    %181 = vector.load %arg7[%180, %c0_78] : memref<64x128xf32, #tpu.memory_space<vmem>>, vector<8x128xf32>
    %c0_79 = arith.constant 0 : index
    %c0_80 = arith.constant 0 : index
    %182 = vector.load %arg2[%c0_79, %c0_80] : memref<128x128xf32, #tpu.memory_space<vmem>>, vector<128x128xf32>
    %cst_81 = arith.constant dense<0.000000e+00> : vector<8x128xf32>
    %183 = tpu.matmul %167, %182, %cst_81 {dimension_numbers = #tpu.dot_dimension_numbers<[1], [0], [0], [1], [0, 0, 1, 1], [], []>} : vector<8x128xf32>, vector<128x128xf32>, vector<8x128xf32> -> vector<8x128xf32>
    %cst_82 = arith.constant 2.000000e+01 : f32
    %184 = vector.broadcast %cst_82 : f32 to vector<8x128xf32>
    %185 = arith.cmpf ogt, %163, %184 : vector<8x128xf32>
    %186 = arith.extui %185 : vector<8x128xi1> to vector<8x128xi32>
    %187 = arith.sitofp %186 : vector<8x128xi32> to vector<8x128xf32>
    %cst_83 = arith.constant 0.899999976 : f32
    %188 = vector.broadcast %cst_83 : f32 to vector<8x128xf32>
    %189 = arith.mulf %188, %157 : vector<8x128xf32>
    %190 = arith.addf %189, %181 : vector<8x128xf32>
    %191 = arith.addf %190, %183 : vector<8x128xf32>
    %cst_84 = arith.constant 0.899999976 : f32
    %192 = vector.broadcast %cst_84 : f32 to vector<8x128xf32>
    %193 = arith.mulf %192, %163 : vector<8x128xf32>
    %194 = arith.addf %193, %191 : vector<8x128xf32>
    %cst_85 = arith.constant 2.000000e+01 : f32
    %195 = vector.broadcast %cst_85 : f32 to vector<8x128xf32>
    %196 = arith.mulf %187, %195 : vector<8x128xf32>
    %197 = arith.subf %194, %196 : vector<8x128xf32>
    %cst_86 = arith.constant 2.000000e+01 : f32
    %198 = vector.broadcast %cst_86 : f32 to vector<8x128xf32>
    %199 = arith.cmpf ogt, %197, %198 : vector<8x128xf32>
    %200 = arith.extui %199 : vector<8x128xi1> to vector<8x128xi32>
    %201 = arith.sitofp %200 : vector<8x128xi32> to vector<8x128xf32>
    %202 = arith.index_cast %c5_i32 : i32 to index
    %c0_87 = arith.constant 0 : index
    %c0_88 = arith.constant 0 : index
    %203 = vector.load %arg5[%202, %c0_87, %c0_88] : memref<8x8x128xf32, #tpu.memory_space<vmem>>, vector<1x8x128xf32>
    %204 = vector.shape_cast %203 : vector<1x8x128xf32> to vector<8x128xf32>
    %205 = vector.shape_cast %201 : vector<8x128xf32> to vector<1x8x128xf32>
    tpu.vector_store %arg5[%202, %c0_87, %c0_88], %205 {strides = array<i32>} : memref<8x8x128xf32, #tpu.memory_space<vmem>>, vector<1x8x128xf32>,
    %206 = vector.extract_strided_slice %201 {offsets = [0, 0], sizes = [1, 128], strides = [1, 1]} : vector<8x128xf32> to vector<1x128xf32>
    %207 = arith.index_cast %c5_i32 : i32 to index
    %c0_89 = arith.constant 0 : index
    %208 = vector.load %arg8[%207, %c0_89] : memref<8x128xf32, #tpu.memory_space<vmem>>, vector<1x128xf32>
    tpu.vector_store %arg8[%207, %c0_89], %206 {strides = array<i32>} : memref<8x128xf32, #tpu.memory_space<vmem>>, vector<1x128xf32>,
    %209 = vector.extract_strided_slice %167 {offsets = [0, 0], sizes = [1, 128], strides = [1, 1]} : vector<8x128xf32> to vector<1x128xf32>
    %210 = arith.index_cast %c5_i32 : i32 to index
    %c0_90 = arith.constant 0 : index
    %211 = vector.load %arg9[%210, %c0_90] : memref<8x128xf32, #tpu.memory_space<vmem>>, vector<1x128xf32>
    tpu.vector_store %arg9[%210, %c0_90], %209 {strides = array<i32>} : memref<8x128xf32, #tpu.memory_space<vmem>>, vector<1x128xf32>,
    %c6_i32 = arith.constant 6 : i32
    %c8_i32_91 = arith.constant 8 : i32
    %212 = arith.muli %c6_i32, %c8_i32_91 : i32
    %213 = tpu.assume_multiple %212, 8 : i32
    %214 = arith.index_cast %213 : i32 to index
    %c0_92 = arith.constant 0 : index
    %215 = vector.load %arg7[%214, %c0_92] : memref<64x128xf32, #tpu.memory_space<vmem>>, vector<8x128xf32>
    %c0_93 = arith.constant 0 : index
    %c0_94 = arith.constant 0 : index
    %216 = vector.load %arg2[%c0_93, %c0_94] : memref<128x128xf32, #tpu.memory_space<vmem>>, vector<128x128xf32>
    %cst_95 = arith.constant dense<0.000000e+00> : vector<8x128xf32>
    %217 = tpu.matmul %201, %216, %cst_95 {dimension_numbers = #tpu.dot_dimension_numbers<[1], [0], [0], [1], [0, 0, 1, 1], [], []>} : vector<8x128xf32>, vector<128x128xf32>, vector<8x128xf32> -> vector<8x128xf32>
    %cst_96 = arith.constant 2.000000e+01 : f32
    %218 = vector.broadcast %cst_96 : f32 to vector<8x128xf32>
    %219 = arith.cmpf ogt, %197, %218 : vector<8x128xf32>
    %220 = arith.extui %219 : vector<8x128xi1> to vector<8x128xi32>
    %221 = arith.sitofp %220 : vector<8x128xi32> to vector<8x128xf32>
    %cst_97 = arith.constant 0.899999976 : f32
    %222 = vector.broadcast %cst_97 : f32 to vector<8x128xf32>
    %223 = arith.mulf %222, %191 : vector<8x128xf32>
    %224 = arith.addf %223, %215 : vector<8x128xf32>
    %225 = arith.addf %224, %217 : vector<8x128xf32>
    %cst_98 = arith.constant 0.899999976 : f32
    %226 = vector.broadcast %cst_98 : f32 to vector<8x128xf32>
    %227 = arith.mulf %226, %197 : vector<8x128xf32>
    %228 = arith.addf %227, %225 : vector<8x128xf32>
    %cst_99 = arith.constant 2.000000e+01 : f32
    %229 = vector.broadcast %cst_99 : f32 to vector<8x128xf32>
    %230 = arith.mulf %221, %229 : vector<8x128xf32>
    %231 = arith.subf %228, %230 : vector<8x128xf32>
    %cst_100 = arith.constant 2.000000e+01 : f32
    %232 = vector.broadcast %cst_100 : f32 to vector<8x128xf32>
    %233 = arith.cmpf ogt, %231, %232 : vector<8x128xf32>
    %234 = arith.extui %233 : vector<8x128xi1> to vector<8x128xi32>
    %235 = arith.sitofp %234 : vector<8x128xi32> to vector<8x128xf32>
    %236 = arith.index_cast %c6_i32 : i32 to index
    %c0_101 = arith.constant 0 : index
    %c0_102 = arith.constant 0 : index
    %237 = vector.load %arg5[%236, %c0_101, %c0_102] : memref<8x8x128xf32, #tpu.memory_space<vmem>>, vector<1x8x128xf32>
    %238 = vector.shape_cast %237 : vector<1x8x128xf32> to vector<8x128xf32>
    %239 = vector.shape_cast %235 : vector<8x128xf32> to vector<1x8x128xf32>
    tpu.vector_store %arg5[%236, %c0_101, %c0_102], %239 {strides = array<i32>} : memref<8x8x128xf32, #tpu.memory_space<vmem>>, vector<1x8x128xf32>,
    %240 = vector.extract_strided_slice %235 {offsets = [0, 0], sizes = [1, 128], strides = [1, 1]} : vector<8x128xf32> to vector<1x128xf32>
    %241 = arith.index_cast %c6_i32 : i32 to index
    %c0_103 = arith.constant 0 : index
    %242 = vector.load %arg8[%241, %c0_103] : memref<8x128xf32, #tpu.memory_space<vmem>>, vector<1x128xf32>
    tpu.vector_store %arg8[%241, %c0_103], %240 {strides = array<i32>} : memref<8x128xf32, #tpu.memory_space<vmem>>, vector<1x128xf32>,
    %243 = vector.extract_strided_slice %201 {offsets = [0, 0], sizes = [1, 128], strides = [1, 1]} : vector<8x128xf32> to vector<1x128xf32>
    %244 = arith.index_cast %c6_i32 : i32 to index
    %c0_104 = arith.constant 0 : index
    %245 = vector.load %arg9[%244, %c0_104] : memref<8x128xf32, #tpu.memory_space<vmem>>, vector<1x128xf32>
    tpu.vector_store %arg9[%244, %c0_104], %243 {strides = array<i32>} : memref<8x128xf32, #tpu.memory_space<vmem>>, vector<1x128xf32>,
    %c7_i32 = arith.constant 7 : i32
    %c8_i32_105 = arith.constant 8 : i32
    %246 = arith.muli %c7_i32, %c8_i32_105 : i32
    %247 = tpu.assume_multiple %246, 8 : i32
    %248 = arith.index_cast %247 : i32 to index
    %c0_106 = arith.constant 0 : index
    %249 = vector.load %arg7[%248, %c0_106] : memref<64x128xf32, #tpu.memory_space<vmem>>, vector<8x128xf32>
    %c0_107 = arith.constant 0 : index
    %c0_108 = arith.constant 0 : index
    %250 = vector.load %arg2[%c0_107, %c0_108] : memref<128x128xf32, #tpu.memory_space<vmem>>, vector<128x128xf32>
    %cst_109 = arith.constant dense<0.000000e+00> : vector<8x128xf32>
    %251 = tpu.matmul %235, %250, %cst_109 {dimension_numbers = #tpu.dot_dimension_numbers<[1], [0], [0], [1], [0, 0, 1, 1], [], []>} : vector<8x128xf32>, vector<128x128xf32>, vector<8x128xf32> -> vector<8x128xf32>
    %cst_110 = arith.constant 2.000000e+01 : f32
    %252 = vector.broadcast %cst_110 : f32 to vector<8x128xf32>
    %253 = arith.cmpf ogt, %231, %252 : vector<8x128xf32>
    %254 = arith.extui %253 : vector<8x128xi1> to vector<8x128xi32>
    %255 = arith.sitofp %254 : vector<8x128xi32> to vector<8x128xf32>
    %cst_111 = arith.constant 0.899999976 : f32
    %256 = vector.broadcast %cst_111 : f32 to vector<8x128xf32>
    %257 = arith.mulf %256, %225 : vector<8x128xf32>
    %258 = arith.addf %257, %249 : vector<8x128xf32>
    %259 = arith.addf %258, %251 : vector<8x128xf32>
    %cst_112 = arith.constant 0.899999976 : f32
    %260 = vector.broadcast %cst_112 : f32 to vector<8x128xf32>
    %261 = arith.mulf %260, %231 : vector<8x128xf32>
    %262 = arith.addf %261, %259 : vector<8x128xf32>
    %cst_113 = arith.constant 2.000000e+01 : f32
    %263 = vector.broadcast %cst_113 : f32 to vector<8x128xf32>
    %264 = arith.mulf %255, %263 : vector<8x128xf32>
    %265 = arith.subf %262, %264 : vector<8x128xf32>
    %cst_114 = arith.constant 2.000000e+01 : f32
    %266 = vector.broadcast %cst_114 : f32 to vector<8x128xf32>
    %267 = arith.cmpf ogt, %265, %266 : vector<8x128xf32>
    %268 = arith.extui %267 : vector<8x128xi1> to vector<8x128xi32>
    %269 = arith.sitofp %268 : vector<8x128xi32> to vector<8x128xf32>
    %270 = arith.index_cast %c7_i32 : i32 to index
    %c0_115 = arith.constant 0 : index
    %c0_116 = arith.constant 0 : index
    %271 = vector.load %arg5[%270, %c0_115, %c0_116] : memref<8x8x128xf32, #tpu.memory_space<vmem>>, vector<1x8x128xf32>
    %272 = vector.shape_cast %271 : vector<1x8x128xf32> to vector<8x128xf32>
    %273 = vector.shape_cast %269 : vector<8x128xf32> to vector<1x8x128xf32>
    tpu.vector_store %arg5[%270, %c0_115, %c0_116], %273 {strides = array<i32>} : memref<8x8x128xf32, #tpu.memory_space<vmem>>, vector<1x8x128xf32>,
    %274 = vector.extract_strided_slice %269 {offsets = [0, 0], sizes = [1, 128], strides = [1, 1]} : vector<8x128xf32> to vector<1x128xf32>
    %275 = arith.index_cast %c7_i32 : i32 to index
    %c0_117 = arith.constant 0 : index
    %276 = vector.load %arg8[%275, %c0_117] : memref<8x128xf32, #tpu.memory_space<vmem>>, vector<1x128xf32>
    tpu.vector_store %arg8[%275, %c0_117], %274 {strides = array<i32>} : memref<8x128xf32, #tpu.memory_space<vmem>>, vector<1x128xf32>,
    %277 = vector.extract_strided_slice %235 {offsets = [0, 0], sizes = [1, 128], strides = [1, 1]} : vector<8x128xf32> to vector<1x128xf32>
    %278 = arith.index_cast %c7_i32 : i32 to index
    %c0_118 = arith.constant 0 : index
    %279 = vector.load %arg9[%278, %c0_118] : memref<8x128xf32, #tpu.memory_space<vmem>>, vector<1x128xf32>
    tpu.vector_store %arg9[%278, %c0_118], %277 {strides = array<i32>} : memref<8x128xf32, #tpu.memory_space<vmem>>, vector<1x128xf32>,
    %c8_i32_119 = arith.constant 8 : i32
    %c0_120 = arith.constant 0 : index
    %c0_121 = arith.constant 0 : index
    %280 = vector.load %arg8[%c0_120, %c0_121] : memref<8x128xf32, #tpu.memory_space<vmem>>, vector<8x128xf32>
    %c0_122 = arith.constant 0 : index
    %c0_123 = arith.constant 0 : index
    %281 = vector.load %arg9[%c0_122, %c0_123] : memref<8x128xf32, #tpu.memory_space<vmem>>, vector<8x128xf32>
    %cst_124 = arith.constant dense<0.000000e+00> : vector<128x128xf32>
    %282 = tpu.matmul %280, %281, %cst_124 {dimension_numbers = #tpu.dot_dimension_numbers<[0], [0], [1], [1], [0, 1, 1, 1], [], []>} : vector<8x128xf32>, vector<8x128xf32>, vector<128x128xf32> -> vector<128x128xf32>
    %c0_125 = arith.constant 0 : index
    %c0_126 = arith.constant 0 : index
    %283 = vector.load %arg4[%c0_125, %c0_126] : memref<128x128xf32, #tpu.memory_space<vmem>>, vector<128x128xf32>
    %cst_127 = arith.constant 5.000000e-01 : f32
    %284 = vector.broadcast %cst_127 : f32 to vector<128x128xf32>
    %285 = arith.cmpf ogt, %282, %284 : vector<128x128xf32>
    %cst_128 = arith.constant -1.00041674E-4 : f32
    %286 = vector.broadcast %cst_128 : f32 to vector<128x128xf32>
    %287 = arith.mulf %282, %286 : vector<128x128xf32>
    %288 = arith.addf %283, %287 : vector<128x128xf32>
    %cst_129 = arith.constant -1.000000e+00 : f32
    %cst_130 = arith.constant 1.000000e+00 : f32
    %289 = vector.broadcast %cst_129 : f32 to vector<128x128xf32>
    %290 = arith.maximumf %289, %288 : vector<128x128xf32>
    %291 = vector.broadcast %cst_130 : f32 to vector<128x128xf32>
    %292 = arith.minimumf %291, %290 : vector<128x128xf32>
    %293 = arith.select %285, %292, %283 : vector<128x128xi1>, vector<128x128xf32>
    %c0_131 = arith.constant 0 : index
    %c0_132 = arith.constant 0 : index
    %294 = vector.load %arg6[%c0_131, %c0_132] : memref<128x128xf32, #tpu.memory_space<vmem>>, vector<128x128xf32>
    tpu.vector_store %arg6[%c0_131, %c0_132], %293 {strides = array<i32>} : memref<128x128xf32, #tpu.memory_space<vmem>>, vector<128x128xf32>,
    return
  }
}

</mosaic_0001>

<llo_original>
// kernel: tpu_custom_call.1
$region0: #{tpu_custom_call.1}
  #allocation0 [shape = 'u32[]', space=smem, size = 0x4, offset = 0x4, fixed_abs, tag = 'smem constant byte address 0x4 - core index']
  #allocation1 [shape = 'u32[144,128]{1,0:T(1,128)}', space=vmem, size = 0x12000, scoped, tag = 'internal scratch']
  #allocation2 [shape = 'f32[64,128]{1,0:T(8,128)}', space=vmem, size = 0x8000, scoped, tag = 'scratch operand']
  #allocation3 [shape = 'f32[8,128]{1,0:T(8,128)}', space=vmem, size = 0x1000, scoped, tag = 'scratch operand']
  #allocation4 [shape = 'f32[8,128]{1,0:T(8,128)}', space=vmem, size = 0x1000, scoped, tag = 'scratch operand']
  %s0 = inlined_call_operand.vmem [shape: f32[64,32], index: 0, kind: input, shape index: {}]
  %s1 = inlined_call_operand.vmem [shape: f32[32,128], index: 1, kind: input, shape index: {}]
  %s2 = inlined_call_operand.hbm [shape: f32[128,128], index: 2, kind: input, shape index: {}]
  %s3 = inlined_call_operand.vmem [shape: f32[1,128], index: 3, kind: input, shape index: {}]
  %s4 = inlined_call_operand.hbm [shape: f32[128,128], index: 4, kind: input, shape index: {}]
  %s5 = inlined_call_operand.hbm [shape: f32[8,8,128], index: 5, kind: output, shape index: {0}]
  %s6 = inlined_call_operand.hbm [shape: f32[128,128], index: 6, kind: output, shape index: {1}]
  %7 = xla_tuple %s5, %s6
  %s8 = sld [smem:[#allocation0]]
  $region46: #{tpu_custom_call.1} parent=0
    _
  %s10 = ssub.s32 1, %s8
  %s11 = scalar_select 0, %s10, %s8
  $region1: #{tpu_custom_call.1} parent=0
    #allocation5 [shape = 'u8[65536]{0}', space=vmem, size = 0x10000, scoped, tag = 'input window, operand 2, single buffered']
    #allocation6 [shape = 's32[1]{0}', space=sflag, size = 0x4, scoped, tag = 'scoped memory for tpu_custom_call.1']
    #allocation7 [shape = 's32[1]{0}', space=sflag, size = 0x4, scoped, tag = 'scoped memory for tpu_custom_call.1']
    #allocation8 [shape = 'u8[65536]{0}', space=vmem, size = 0x10000, scoped, tag = 'input window, operand 4, single buffered']
    #allocation9 [shape = 's32[1]{0}', space=sflag, size = 0x4, scoped, tag = 'scoped memory for tpu_custom_call.1']
    #allocation10 [shape = 'u8[32768]{0}', space=vmem, size = 0x8000, scoped, tag = 'output window, operand 0, single buffered']
    #allocation11 [shape = 'u8[65536]{0}', space=vmem, size = 0x10000, scoped, tag = 'output window, operand 1, single buffered']
    #allocation12 [shape = 's32[1]{0}', space=sflag, size = 0x4, scoped, tag = 'scoped memory for tpu_custom_call.1']
    %12 = vsyncpa [#allocation6], 0
    %13 = vsyncpa [#allocation9], 0
    %14 = vsyncpa [#allocation7], 0
    %15 = vsyncpa [#allocation12], 0
    // Predicated region
    $region2: #{tpu_custom_call.1} parent=1 // pred_check
      _
    $region3: #{tpu_custom_call.1} parent=1 // pred_check_branch
      %17 = sbr.rel (0) target = $region5
    $region4: #{tpu_custom_call.1} parent=1 // pred_region
      _
    $region5: #{tpu_custom_call.1} parent=1 // pred_fallthru
      _
    // Predicated region
    $region6: #{tpu_custom_call.1} parent=1 // pred_check
      _
    $region7: #{tpu_custom_call.1} parent=1 // pred_check_branch
      %19 = sbr.rel (0) target = $region9
    $region8: #{tpu_custom_call.1} parent=1 // pred_region
      _
    $region9: #{tpu_custom_call.1} parent=1 // pred_fallthru
      _
    // Predicated region
    $region10: #{tpu_custom_call.1} parent=1 // pred_check
      _
    $region11: #{tpu_custom_call.1} parent=1 // pred_check_branch
      %21 = sbr.rel (0) target = $region13
    $region12: #{tpu_custom_call.1} parent=1 // pred_region
      %s23 = ssub.s32 2048, 2048
      %24 = vsyncadd [#allocation6], %s23
      %s25 = sshll.u32 [#allocation5], 4
      %s26 = int_to_ptr.vmem [resolvable:$true] %s25
      %31 = dma.hbm_to_vmem [thread:$0]  %s2, 2048, %s26, [#allocation6], 128, 128, 8
    $region13: #{tpu_custom_call.1} parent=1 // pred_fallthru
      _
    // Predicated region
    $region14: #{tpu_custom_call.1} parent=1 // pred_check
      _
    $region15: #{tpu_custom_call.1} parent=1 // pred_check_branch
      %33 = sbr.rel (0) target = $region17
    $region16: #{tpu_custom_call.1} parent=1 // pred_region
      _
    $region17: #{tpu_custom_call.1} parent=1 // pred_fallthru
      _
    // Predicated region
    $region18: #{tpu_custom_call.1} parent=1 // pred_check
      _
    $region19: #{tpu_custom_call.1} parent=1 // pred_check_branch
      %35 = sbr.rel (0) target = $region21
    $region20: #{tpu_custom_call.1} parent=1 // pred_region
      %s37 = ssub.s32 2048, 2048
      %38 = vsyncadd [#allocation9], %s37
      %s39 = sshll.u32 [#allocation8], 4
      %s40 = int_to_ptr.vmem [resolvable:$true] %s39
      %45 = dma.hbm_to_vmem [thread:$0]  %s4, 2048, %s40, [#allocation9], 128, 128, 8
    $region21: #{tpu_custom_call.1} parent=1 // pred_fallthru
      _
    // Predicated region
    $region22: #{tpu_custom_call.1} parent=1 // pred_check
      _
    $region23: #{tpu_custom_call.1} parent=1 // pred_check_branch
      %47 = sbr.rel (0) target = $region25
    $region24: #{tpu_custom_call.1} parent=1 // pred_region
      %48 = dma.done [#allocation6], 2048
    $region25: #{tpu_custom_call.1} parent=1 // pred_fallthru
      _
    // Predicated region
    $region26: #{tpu_custom_call.1} parent=1 // pred_check
      _
    $region27: #{tpu_custom_call.1} parent=1 // pred_check_branch
      %50 = sbr.rel (0) target = $region29
    $region28: #{tpu_custom_call.1} parent=1 // pred_region
      %51 = dma.done [#allocation9], 2048
    $region29: #{tpu_custom_call.1} parent=1 // pred_fallthru
      _
    %v52 = vld [vmem:[%s0] sm:$0xff]
    %v53 = vld [vmem:[%s0 + $0x8] sm:$0xff]
    %v54 = vld [vmem:[%s0 + $0x10] sm:$0xff]
    %v55 = vld [vmem:[%s0 + $0x18] sm:$0xff]
    %v56 = vld [vmem:[%s0 + $0x20] sm:$0xff]
    %v57 = vld [vmem:[%s0 + $0x28] sm:$0xff]
    %v58 = vld [vmem:[%s0 + $0x30] sm:$0xff]
    %v59 = vld [vmem:[%s0 + $0x38] sm:$0xff]
    %v60 = vld [vmem:[%s1] sm:$0xff]
    %v61 = vld [vmem:[%s1 + $0x8] sm:$0xff]
    %v62 = vld [vmem:[%s1 + $0x10] sm:$0xff]
    %v63 = vld [vmem:[%s1 + $0x18] sm:$0xff]
    %v64 = vld [vmem:[%s3] sm:$0x1]
    %v66 = vlaneseq
    %v67 = vshrl.u32 %v66, 7
    %v68 = vsub.s32 0, %v67
    %v69 = vrot.slane %v64, %v68
    %vm71 = vcmask 261120
    %v73 = vsel %vm71, %v52, 0
    %v76 = vsel %vm71, %v53, 0
    %v79 = vsel %vm71, %v54, 0
    %v82 = vsel %vm71, %v55, 0
    %v85 = vsel %vm71, %v56, 0
    %v88 = vsel %vm71, %v57, 0
    %v91 = vsel %vm71, %v58, 0
    %v94 = vsel %vm71, %v59, 0
    %96 = vmatprep.subr.mxu0 0.0
    %97 = vmatpush1.msra.mxu0 0.0
    %98 = vmatprep.subr.mxu0 0.0
    %99 = vmatpush1.msra.mxu0 0.0
    %100 = vmatprep.subr.mxu0 0.0
    %101 = vmatpush1.msra.mxu0 0.0
    %102 = vmatprep.subr.mxu0 0.0
    %103 = vmatpush1.msra.mxu0 0.0
    %104 = vmatprep.subr.mxu0 0.0
    %105 = vmatpush1.msra.mxu0 0.0
    %106 = vmatprep.subr.mxu0 0.0
    %107 = vmatpush1.msra.mxu0 0.0
    %108 = vmatprep.subr.mxu0 0.0
    %109 = vmatpush1.msra.mxu0 0.0
    %110 = vmatprep.subr.mxu0 0.0
    %111 = vmatpush1.msra.mxu0 0.0
    %112 = vmatprep.subr.mxu0 0.0
    %113 = vmatpush1.msra.mxu0 0.0
    %114 = vmatprep.subr.mxu0 0.0
    %115 = vmatpush1.msra.mxu0 0.0
    %116 = vmatprep.subr.mxu0 0.0
    %117 = vmatpush1.msra.mxu0 0.0
    %118 = vmatprep.subr.mxu0 0.0
    %119 = vmatpush1.msra.mxu0 0.0
    %120 = vmatprep.subr.mxu0 0.0
    %121 = vmatpush1.msra.mxu0 %v63
    %122 = vmatprep.subr.mxu0 0.0
    %123 = vmatpush1.msra.mxu0 %v62
    %124 = vmatprep.subr.mxu0 0.0
    %125 = vmatpush1.msra.mxu0 %v61
    %126 = vmatprep.subr.mxu0 0.0
    %127 = vmatpush1.msra.mxu0 %v60
    %128 = vmatprep.subr.mxu0 0.0
    %129 = vmatpush2.msra.mxu0 0.0
    %130 = vmatprep.subr.mxu0 0.0
    %131 = vmatpush2.msra.mxu0 0.0
    %132 = vmatprep.subr.mxu0 0.0
    %133 = vmatpush2.msra.mxu0 0.0
    %134 = vmatprep.subr.mxu0 0.0
    %135 = vmatpush2.msra.mxu0 0.0
    %136 = vmatprep.subr.mxu0 0.0
    %137 = vmatpush2.msra.mxu0 0.0
    %138 = vmatprep.subr.mxu0 0.0
    %139 = vmatpush2.msra.mxu0 0.0
    %140 = vmatprep.subr.mxu0 0.0
    %141 = vmatpush2.msra.mxu0 0.0
    %142 = vmatprep.subr.mxu0 0.0
    %143 = vmatpush2.msra.mxu0 0.0
    %144 = vmatprep.subr.mxu0 0.0
    %145 = vmatpush2.msra.mxu0 0.0
    %146 = vmatprep.subr.mxu0 0.0
    %147 = vmatpush2.msra.mxu0 0.0
    %148 = vmatprep.subr.mxu0 0.0
    %149 = vmatpush2.msra.mxu0 0.0
    %150 = vmatprep.subr.mxu0 0.0
    %151 = vmatpush2.msra.mxu0 0.0
    %152 = vmatprep.subr.mxu0 0.0
    %153 = vmatpush2.msra.mxu0 0.0
    %154 = vmatprep.subr.mxu0 0.0
    %155 = vmatpush2.msra.mxu0 0.0
    %156 = vmatprep.subr.mxu0 0.0
    %157 = vmatpush2.msra.mxu0 0.0
    %158 = vmatprep.subr.mxu0 0.0
    %159 = vmatpush2.msra.mxu0 0.0
    %160 = vmatprep.mubr.f32.mxu0 0.0
    %161 = vmatmul.mubr.f32.gmra.mxu0 %v73
    %v162 = vpop.f32.mrf.mxu0
    %v163 = vadd.f32 %v69, %v162
    %v164 = vpop.f32.mrf.mxu0
    %165 = vmatprep.mubr.f32.mxu0 0.0
    %166 = vmatmul.mubr.f32.gmra.mxu0 %v76
    %v167 = vpop.f32.mrf.mxu0
    %v168 = vadd.f32 %v69, %v167
    %v169 = vpop.f32.mrf.mxu0
    %170 = vmatprep.mubr.f32.mxu0 0.0
    %171 = vmatmul.mubr.f32.gmra.mxu0 %v79
    %v172 = vpop.f32.mrf.mxu0
    %v173 = vadd.f32 %v69, %v172
    %v174 = vpop.f32.mrf.mxu0
    %175 = vmatprep.mubr.f32.mxu0 0.0
    %176 = vmatmul.mubr.f32.gmra.mxu0 %v82
    %v177 = vpop.f32.mrf.mxu0
    %v178 = vadd.f32 %v69, %v177
    %v179 = vpop.f32.mrf.mxu0
    %180 = vmatprep.mubr.f32.mxu0 0.0
    %181 = vmatmul.mubr.f32.gmra.mxu0 %v85
    %v182 = vpop.f32.mrf.mxu0
    %v183 = vadd.f32 %v69, %v182
    %v184 = vpop.f32.mrf.mxu0
    %185 = vmatprep.mubr.f32.mxu0 0.0
    %186 = vmatmul.mubr.f32.gmra.mxu0 %v88
    %v187 = vpop.f32.mrf.mxu0
    %v188 = vadd.f32 %v69, %v187
    %v189 = vpop.f32.mrf.mxu0
    %190 = vmatprep.mubr.f32.mxu0 0.0
    %191 = vmatmul.mubr.f32.gmra.mxu0 %v91
    %v192 = vpop.f32.mrf.mxu0
    %v193 = vadd.f32 %v69, %v192
    %v194 = vpop.f32.mrf.mxu0
    %195 = vmatprep.mubr.f32.mxu0 0.0
    %196 = vmatmul.mubr.f32.gmra.mxu0 %v94
    %v197 = vpop.f32.mrf.mxu0
    %v198 = vadd.f32 %v69, %v197
    %v199 = vpop.f32.mrf.mxu0
    %200 = vdwg.mxu0
    %201 = vst [vmem:[#allocation2] sm:$0xff] %v163
    %202 = vst [vmem:[#allocation2 + $0x8] sm:$0xff] %v168
    %203 = vst [vmem:[#allocation2 + $0x10] sm:$0xff] %v173
    %204 = vst [vmem:[#allocation2 + $0x18] sm:$0xff] %v178
    %205 = vst [vmem:[#allocation2 + $0x20] sm:$0xff] %v183
    %206 = vst [vmem:[#allocation2 + $0x28] sm:$0xff] %v188
    %207 = vst [vmem:[#allocation2 + $0x30] sm:$0xff] %v193
    %208 = vst [vmem:[#allocation2 + $0x38] sm:$0xff] %v198
    %v209 = vld [vmem:[#allocation2] sm:$0xff]
    %v210 = vld [vmem:[#allocation5] sm:$0xff]
    %v211 = vld [vmem:[#allocation5 + $0x8] sm:$0xff]
    %v212 = vld [vmem:[#allocation5 + $0x10] sm:$0xff]
    %v213 = vld [vmem:[#allocation5 + $0x18] sm:$0xff]
    %v214 = vld [vmem:[#allocation5 + $0x20] sm:$0xff]
    %v215 = vld [vmem:[#allocation5 + $0x28] sm:$0xff]
    %v216 = vld [vmem:[#allocation5 + $0x30] sm:$0xff]
    %v217 = vld [vmem:[#allocation5 + $0x38] sm:$0xff]
    %v218 = vld [vmem:[#allocation5 + $0x40] sm:$0xff]
    %v219 = vld [vmem:[#allocation5 + $0x48] sm:$0xff]
    %v220 = vld [vmem:[#allocation5 + $0x50] sm:$0xff]
    %v221 = vld [vmem:[#allocation5 + $0x58] sm:$0xff]
    %v222 = vld [vmem:[#allocation5 + $0x60] sm:$0xff]
    %v223 = vld [vmem:[#allocation5 + $0x68] sm:$0xff]
    %v224 = vld [vmem:[#allocation5 + $0x70] sm:$0xff]
    %v225 = vld [vmem:[#allocation5 + $0x78] sm:$0xff]
    %226 = vmatprep.subr.mxu0 0.0
    %227 = vmatpush1.msra.mxu0 %v225
    %228 = vmatprep.subr.mxu0 0.0
    %229 = vmatpush1.msra.mxu0 %v224
    %230 = vmatprep.subr.mxu0 0.0
    %231 = vmatpush1.msra.mxu0 %v223
    %232 = vmatprep.subr.mxu0 0.0
    %233 = vmatpush1.msra.mxu0 %v222
    %234 = vmatprep.subr.mxu0 0.0
    %235 = vmatpush1.msra.mxu0 %v221
    %236 = vmatprep.subr.mxu0 0.0
    %237 = vmatpush1.msra.mxu0 %v220
    %238 = vmatprep.subr.mxu0 0.0
    %239 = vmatpush1.msra.mxu0 %v219
    %240 = vmatprep.subr.mxu0 0.0
    %241 = vmatpush1.msra.mxu0 %v218
    %242 = vmatprep.subr.mxu0 0.0
    %243 = vmatpush1.msra.mxu0 %v217
    %244 = vmatprep.subr.mxu0 0.0
    %245 = vmatpush1.msra.mxu0 %v216
    %246 = vmatprep.subr.mxu0 0.0
    %247 = vmatpush1.msra.mxu0 %v215
    %248 = vmatprep.subr.mxu0 0.0
    %249 = vmatpush1.msra.mxu0 %v214
    %250 = vmatprep.subr.mxu0 0.0
    %251 = vmatpush1.msra.mxu0 %v213
    %252 = vmatprep.subr.mxu0 0.0
    %253 = vmatpush1.msra.mxu0 %v212
    %254 = vmatprep.subr.mxu0 0.0
    %255 = vmatpush1.msra.mxu0 %v211
    %256 = vmatprep.subr.mxu0 0.0
    %257 = vmatpush1.msra.mxu0 %v210
    %258 = vmatprep.subr.mxu0 0.0
    %259 = vmatpush2.msra.mxu0 0.0
    %260 = vmatprep.subr.mxu0 0.0
    %261 = vmatpush2.msra.mxu0 0.0
    %262 = vmatprep.subr.mxu0 0.0
    %263 = vmatpush2.msra.mxu0 0.0
    %264 = vmatprep.subr.mxu0 0.0
    %265 = vmatpush2.msra.mxu0 0.0
    %266 = vmatprep.subr.mxu0 0.0
    %267 = vmatpush2.msra.mxu0 0.0
    %268 = vmatprep.subr.mxu0 0.0
    %269 = vmatpush2.msra.mxu0 0.0
    %270 = vmatprep.subr.mxu0 0.0
    %271 = vmatpush2.msra.mxu0 0.0
    %272 = vmatprep.subr.mxu0 0.0
    %273 = vmatpush2.msra.mxu0 0.0
    %274 = vmatprep.subr.mxu0 0.0
    %275 = vmatpush2.msra.mxu0 0.0
    %276 = vmatprep.subr.mxu0 0.0
    %277 = vmatpush2.msra.mxu0 0.0
    %278 = vmatprep.subr.mxu0 0.0
    %279 = vmatpush2.msra.mxu0 0.0
    %280 = vmatprep.subr.mxu0 0.0
    %281 = vmatpush2.msra.mxu0 0.0
    %282 = vmatprep.subr.mxu0 0.0
    %283 = vmatpush2.msra.mxu0 0.0
    %284 = vmatprep.subr.mxu0 0.0
    %285 = vmatpush2.msra.mxu0 0.0
    %286 = vmatprep.subr.mxu0 0.0
    %287 = vmatpush2.msra.mxu0 0.0
    %288 = vmatprep.subr.mxu0 0.0
    %289 = vmatpush2.msra.mxu0 0.0
    %290 = vmatprep.mubr.f32.mxu0 0.0
    %291 = vmatmul.mubr.f32.gmra.mxu0 0.0
    %v292 = vpop.f32.mrf.mxu0
    %v293 = vadd.f32 0.0, %v292
    %v294 = vpop.f32.mrf.mxu0
    %295 = vdwg.mxu0
    %vm296 = vcmp.gt.f32.partialorder 0.0, 20.0
    %v297 = vsel %vm296, 1, 0
    %v298 = vcvt.s32.f32 %v297
    %v299 = vadd.f32 %v209, 0.0
    %v300 = vadd.f32 %v299, %v293
    %v301 = vadd.f32 %v300, 0.0
    %v302 = vmul.f32 %v298, 20.0
    %v303 = vsub.f32 %v301, %v302
    %vm304 = vcmp.gt.f32.partialorder %v303, 20.0
    %v305 = vsel %vm304, 1, 0
    %v306 = vcvt.s32.f32 %v305
    %307 = vst [vmem:[#allocation10] sm:$0xff] %v306
    %308 = vst [vmem:[#allocation3] sm:$0x1] %v306
    %309 = vst [vmem:[#allocation4] sm:$0x1] 0.0
    %s310 = scalar_lea.vmem [#allocation2], 8
    %v311 = vld [vmem:[%s310] sm:$0xff]
    %v312 = vld [vmem:[#allocation5] sm:$0xff]
    %v313 = vld [vmem:[#allocation5 + $0x8] sm:$0xff]
    %v314 = vld [vmem:[#allocation5 + $0x10] sm:$0xff]
    %v315 = vld [vmem:[#allocation5 + $0x18] sm:$0xff]
    %v316 = vld [vmem:[#allocation5 + $0x20] sm:$0xff]
    %v317 = vld [vmem:[#allocation5 + $0x28] sm:$0xff]
    %v318 = vld [vmem:[#allocation5 + $0x30] sm:$0xff]
    %v319 = vld [vmem:[#allocation5 + $0x38] sm:$0xff]
    %v320 = vld [vmem:[#allocation5 + $0x40] sm:$0xff]
    %v321 = vld [vmem:[#allocation5 + $0x48] sm:$0xff]
    %v322 = vld [vmem:[#allocation5 + $0x50] sm:$0xff]
    %v323 = vld [vmem:[#allocation5 + $0x58] sm:$0xff]
    %v324 = vld [vmem:[#allocation5 + $0x60] sm:$0xff]
    %v325 = vld [vmem:[#allocation5 + $0x68] sm:$0xff]
    %v326 = vld [vmem:[#allocation5 + $0x70] sm:$0xff]
    %v327 = vld [vmem:[#allocation5 + $0x78] sm:$0xff]
    %328 = vmatprep.subr.mxu0 0.0
    %329 = vmatpush1.msra.mxu0 %v327
    %330 = vmatprep.subr.mxu0 0.0
    %331 = vmatpush1.msra.mxu0 %v326
    %332 = vmatprep.subr.mxu0 0.0
    %333 = vmatpush1.msra.mxu0 %v325
    %334 = vmatprep.subr.mxu0 0.0
    %335 = vmatpush1.msra.mxu0 %v324
    %336 = vmatprep.subr.mxu0 0.0
    %337 = vmatpush1.msra.mxu0 %v323
    %338 = vmatprep.subr.mxu0 0.0
    %339 = vmatpush1.msra.mxu0 %v322
    %340 = vmatprep.subr.mxu0 0.0
    %341 = vmatpush1.msra.mxu0 %v321
    %342 = vmatprep.subr.mxu0 0.0
    %343 = vmatpush1.msra.mxu0 %v320
    %344 = vmatprep.subr.mxu0 0.0
    %345 = vmatpush1.msra.mxu0 %v319
    %346 = vmatprep.subr.mxu0 0.0
    %347 = vmatpush1.msra.mxu0 %v318
    %348 = vmatprep.subr.mxu0 0.0
    %349 = vmatpush1.msra.mxu0 %v317
    %350 = vmatprep.subr.mxu0 0.0
    %351 = vmatpush1.msra.mxu0 %v316
    %352 = vmatprep.subr.mxu0 0.0
    %353 = vmatpush1.msra.mxu0 %v315
    %354 = vmatprep.subr.mxu0 0.0
    %355 = vmatpush1.msra.mxu0 %v314
    %356 = vmatprep.subr.mxu0 0.0
    %357 = vmatpush1.msra.mxu0 %v313
    %358 = vmatprep.subr.mxu0 0.0
    %359 = vmatpush1.msra.mxu0 %v312
    %360 = vmatprep.subr.mxu0 0.0
    %361 = vmatpush2.msra.mxu0 0.0
    %362 = vmatprep.subr.mxu0 0.0
    %363 = vmatpush2.msra.mxu0 0.0
    %364 = vmatprep.subr.mxu0 0.0
    %365 = vmatpush2.msra.mxu0 0.0
    %366 = vmatprep.subr.mxu0 0.0
    %367 = vmatpush2.msra.mxu0 0.0
    %368 = vmatprep.subr.mxu0 0.0
    %369 = vmatpush2.msra.mxu0 0.0
    %370 = vmatprep.subr.mxu0 0.0
    %371 = vmatpush2.msra.mxu0 0.0
    %372 = vmatprep.subr.mxu0 0.0
    %373 = vmatpush2.msra.mxu0 0.0
    %374 = vmatprep.subr.mxu0 0.0
    %375 = vmatpush2.msra.mxu0 0.0
    %376 = vmatprep.subr.mxu0 0.0
    %377 = vmatpush2.msra.mxu0 0.0
    %378 = vmatprep.subr.mxu0 0.0
    %379 = vmatpush2.msra.mxu0 0.0
    %380 = vmatprep.subr.mxu0 0.0
    %381 = vmatpush2.msra.mxu0 0.0
    %382 = vmatprep.subr.mxu0 0.0
    %383 = vmatpush2.msra.mxu0 0.0
    %384 = vmatprep.subr.mxu0 0.0
    %385 = vmatpush2.msra.mxu0 0.0
    %386 = vmatprep.subr.mxu0 0.0
    %387 = vmatpush2.msra.mxu0 0.0
    %388 = vmatprep.subr.mxu0 0.0
    %389 = vmatpush2.msra.mxu0 0.0
    %390 = vmatprep.subr.mxu0 0.0
    %391 = vmatpush2.msra.mxu0 0.0
    %392 = vmatprep.mubr.f32.mxu0 0.0
    %393 = vmatmul.mubr.f32.gmra.mxu0 %v306
    %v394 = vpop.f32.mrf.mxu0
    %v395 = vadd.f32 0.0, %v394
    %v396 = vpop.f32.mrf.mxu0
    %397 = vdwg.mxu0
    %v398 = vmul.f32 %v300, 0.9
    %v399 = vadd.f32 %v398, %v311
    %v400 = vadd.f32 %v399, %v395
    %v401 = vmul.f32 %v303, 0.9
    %v402 = vadd.f32 %v401, %v400
    %v403 = vmul.f32 %v306, 20.0
    %v404 = vsub.f32 %v402, %v403
    %vm405 = vcmp.gt.f32.partialorder %v404, 20.0
    %v406 = vsel %vm405, 1, 0
    %v407 = vcvt.s32.f32 %v406
    %s408 = scalar_lea.vmem [#allocation10], 8
    %409 = vst [vmem:[%s408] sm:$0xff] %v407
    %410 = vst [vmem:[#allocation3 + $0x1] sm:$0x1] %v407
    %411 = vst [vmem:[#allocation4 + $0x1] sm:$0x1] %v306
    %s412 = scalar_lea.vmem [#allocation2], 16
    %v413 = vld [vmem:[%s412] sm:$0xff]
    %v414 = vld [vmem:[#allocation5] sm:$0xff]
    %v415 = vld [vmem:[#allocation5 + $0x8] sm:$0xff]
    %v416 = vld [vmem:[#allocation5 + $0x10] sm:$0xff]
    %v417 = vld [vmem:[#allocation5 + $0x18] sm:$0xff]
    %v418 = vld [vmem:[#allocation5 + $0x20] sm:$0xff]
    %v419 = vld [vmem:[#allocation5 + $0x28] sm:$0xff]
    %v420 = vld [vmem:[#allocation5 + $0x30] sm:$0xff]
    %v421 = vld [vmem:[#allocation5 + $0x38] sm:$0xff]
    %v422 = vld [vmem:[#allocation5 + $0x40] sm:$0xff]
    %v423 = vld [vmem:[#allocation5 + $0x48] sm:$0xff]
    %v424 = vld [vmem:[#allocation5 + $0x50] sm:$0xff]
    %v425 = vld [vmem:[#allocation5 + $0x58] sm:$0xff]
    %v426 = vld [vmem:[#allocation5 + $0x60] sm:$0xff]
    %v427 = vld [vmem:[#allocation5 + $0x68] sm:$0xff]
    %v428 = vld [vmem:[#allocation5 + $0x70] sm:$0xff]
    %v429 = vld [vmem:[#allocation5 + $0x78] sm:$0xff]
    %430 = vmatprep.subr.mxu0 0.0
    %431 = vmatpush1.msra.mxu0 %v429
    %432 = vmatprep.subr.mxu0 0.0
    %433 = vmatpush1.msra.mxu0 %v428
    %434 = vmatprep.subr.mxu0 0.0
    %435 = vmatpush1.msra.mxu0 %v427
    %436 = vmatprep.subr.mxu0 0.0
    %437 = vmatpush1.msra.mxu0 %v426
    %438 = vmatprep.subr.mxu0 0.0
    %439 = vmatpush1.msra.mxu0 %v425
    %440 = vmatprep.subr.mxu0 0.0
    %441 = vmatpush1.msra.mxu0 %v424
    %442 = vmatprep.subr.mxu0 0.0
    %443 = vmatpush1.msra.mxu0 %v423
    %444 = vmatprep.subr.mxu0 0.0
    %445 = vmatpush1.msra.mxu0 %v422
    %446 = vmatprep.subr.mxu0 0.0
    %447 = vmatpush1.msra.mxu0 %v421
    %448 = vmatprep.subr.mxu0 0.0
    %449 = vmatpush1.msra.mxu0 %v420
    %450 = vmatprep.subr.mxu0 0.0
    %451 = vmatpush1.msra.mxu0 %v419
    %452 = vmatprep.subr.mxu0 0.0
    %453 = vmatpush1.msra.mxu0 %v418
    %454 = vmatprep.subr.mxu0 0.0
    %455 = vmatpush1.msra.mxu0 %v417
    %456 = vmatprep.subr.mxu0 0.0
    %457 = vmatpush1.msra.mxu0 %v416
    %458 = vmatprep.subr.mxu0 0.0
    %459 = vmatpush1.msra.mxu0 %v415
    %460 = vmatprep.subr.mxu0 0.0
    %461 = vmatpush1.msra.mxu0 %v414
    %462 = vmatprep.subr.mxu0 0.0
    %463 = vmatpush2.msra.mxu0 0.0
    %464 = vmatprep.subr.mxu0 0.0
    %465 = vmatpush2.msra.mxu0 0.0
    %466 = vmatprep.subr.mxu0 0.0
    %467 = vmatpush2.msra.mxu0 0.0
    %468 = vmatprep.subr.mxu0 0.0
    %469 = vmatpush2.msra.mxu0 0.0
    %470 = vmatprep.subr.mxu0 0.0
    %471 = vmatpush2.msra.mxu0 0.0
    %472 = vmatprep.subr.mxu0 0.0
    %473 = vmatpush2.msra.mxu0 0.0
    %474 = vmatprep.subr.mxu0 0.0
    %475 = vmatpush2.msra.mxu0 0.0
    %476 = vmatprep.subr.mxu0 0.0
    %477 = vmatpush2.msra.mxu0 0.0
    %478 = vmatprep.subr.mxu0 0.0
    %479 = vmatpush2.msra.mxu0 0.0
    %480 = vmatprep.subr.mxu0 0.0
    %481 = vmatpush2.msra.mxu0 0.0
    %482 = vmatprep.subr.mxu0 0.0
    %483 = vmatpush2.msra.mxu0 0.0
    %484 = vmatprep.subr.mxu0 0.0
    %485 = vmatpush2.msra.mxu0 0.0
    %486 = vmatprep.subr.mxu0 0.0
    %487 = vmatpush2.msra.mxu0 0.0
    %488 = vmatprep.subr.mxu0 0.0
    %489 = vmatpush2.msra.mxu0 0.0
    %490 = vmatprep.subr.mxu0 0.0
    %491 = vmatpush2.msra.mxu0 0.0
    %492 = vmatprep.subr.mxu0 0.0
    %493 = vmatpush2.msra.mxu0 0.0
    %494 = vmatprep.mubr.f32.mxu0 0.0
    %495 = vmatmul.mubr.f32.gmra.mxu0 %v407
    %v496 = vpop.f32.mrf.mxu0
    %v497 = vadd.f32 0.0, %v496
    %v498 = vpop.f32.mrf.mxu0
    %499 = vdwg.mxu0
    %v500 = vmul.f32 %v400, 0.9
    %v501 = vadd.f32 %v500, %v413
    %v502 = vadd.f32 %v501, %v497
    %v503 = vmul.f32 %v404, 0.9
    %v504 = vadd.f32 %v503, %v502
    %v505 = vmul.f32 %v407, 20.0
    %v506 = vsub.f32 %v504, %v505
    %vm507 = vcmp.gt.f32.partialorder %v506, 20.0
    %v508 = vsel %vm507, 1, 0
    %v509 = vcvt.s32.f32 %v508
    %s510 = scalar_lea.vmem [#allocation10], 16
    %511 = vst [vmem:[%s510] sm:$0xff] %v509
    %512 = vst [vmem:[#allocation3 + $0x2] sm:$0x1] %v509
    %513 = vst [vmem:[#allocation4 + $0x2] sm:$0x1] %v407
    %s514 = scalar_lea.vmem [#allocation2], 24
    %v515 = vld [vmem:[%s514] sm:$0xff]
    %v516 = vld [vmem:[#allocation5] sm:$0xff]
    %v517 = vld [vmem:[#allocation5 + $0x8] sm:$0xff]
    %v518 = vld [vmem:[#allocation5 + $0x10] sm:$0xff]
    %v519 = vld [vmem:[#allocation5 + $0x18] sm:$0xff]
    %v520 = vld [vmem:[#allocation5 + $0x20] sm:$0xff]
    %v521 = vld [vmem:[#allocation5 + $0x28] sm:$0xff]
    %v522 = vld [vmem:[#allocation5 + $0x30] sm:$0xff]
    %v523 = vld [vmem:[#allocation5 + $0x38] sm:$0xff]
    %v524 = vld [vmem:[#allocation5 + $0x40] sm:$0xff]
    %v525 = vld [vmem:[#allocation5 + $0x48] sm:$0xff]
    %v526 = vld [vmem:[#allocation5 + $0x50] sm:$0xff]
    %v527 = vld [vmem:[#allocation5 + $0x58] sm:$0xff]
    %v528 = vld [vmem:[#allocation5 + $0x60] sm:$0xff]
    %v529 = vld [vmem:[#allocation5 + $0x68] sm:$0xff]
    %v530 = vld [vmem:[#allocation5 + $0x70] sm:$0xff]
    %v531 = vld [vmem:[#allocation5 + $0x78] sm:$0xff]
    %532 = vmatprep.subr.mxu0 0.0
    %533 = vmatpush1.msra.mxu0 %v531
    %534 = vmatprep.subr.mxu0 0.0
    %535 = vmatpush1.msra.mxu0 %v530
    %536 = vmatprep.subr.mxu0 0.0
    %537 = vmatpush1.msra.mxu0 %v529
    %538 = vmatprep.subr.mxu0 0.0
    %539 = vmatpush1.msra.mxu0 %v528
    %540 = vmatprep.subr.mxu0 0.0
    %541 = vmatpush1.msra.mxu0 %v527
    %542 = vmatprep.subr.mxu0 0.0
    %543 = vmatpush1.msra.mxu0 %v526
    %544 = vmatprep.subr.mxu0 0.0
    %545 = vmatpush1.msra.mxu0 %v525
    %546 = vmatprep.subr.mxu0 0.0
    %547 = vmatpush1.msra.mxu0 %v524
    %548 = vmatprep.subr.mxu0 0.0
    %549 = vmatpush1.msra.mxu0 %v523
    %550 = vmatprep.subr.mxu0 0.0
    %551 = vmatpush1.msra.mxu0 %v522
    %552 = vmatprep.subr.mxu0 0.0
    %553 = vmatpush1.msra.mxu0 %v521
    %554 = vmatprep.subr.mxu0 0.0
    %555 = vmatpush1.msra.mxu0 %v520
    %556 = vmatprep.subr.mxu0 0.0
    %557 = vmatpush1.msra.mxu0 %v519
    %558 = vmatprep.subr.mxu0 0.0
    %559 = vmatpush1.msra.mxu0 %v518
    %560 = vmatprep.subr.mxu0 0.0
    %561 = vmatpush1.msra.mxu0 %v517
    %562 = vmatprep.subr.mxu0 0.0
    %563 = vmatpush1.msra.mxu0 %v516
    %564 = vmatprep.subr.mxu0 0.0
    %565 = vmatpush2.msra.mxu0 0.0
    %566 = vmatprep.subr.mxu0 0.0
    %567 = vmatpush2.msra.mxu0 0.0
    %568 = vmatprep.subr.mxu0 0.0
    %569 = vmatpush2.msra.mxu0 0.0
    %570 = vmatprep.subr.mxu0 0.0
    %571 = vmatpush2.msra.mxu0 0.0
    %572 = vmatprep.subr.mxu0 0.0
    %573 = vmatpush2.msra.mxu0 0.0
    %574 = vmatprep.subr.mxu0 0.0
    %575 = vmatpush2.msra.mxu0 0.0
    %576 = vmatprep.subr.mxu0 0.0
    %577 = vmatpush2.msra.mxu0 0.0
    %578 = vmatprep.subr.mxu0 0.0
    %579 = vmatpush2.msra.mxu0 0.0
    %580 = vmatprep.subr.mxu0 0.0
    %581 = vmatpush2.msra.mxu0 0.0
    %582 = vmatprep.subr.mxu0 0.0
    %583 = vmatpush2.msra.mxu0 0.0
    %584 = vmatprep.subr.mxu0 0.0
    %585 = vmatpush2.msra.mxu0 0.0
    %586 = vmatprep.subr.mxu0 0.0
    %587 = vmatpush2.msra.mxu0 0.0
    %588 = vmatprep.subr.mxu0 0.0
    %589 = vmatpush2.msra.mxu0 0.0
    %590 = vmatprep.subr.mxu0 0.0
    %591 = vmatpush2.msra.mxu0 0.0
    %592 = vmatprep.subr.mxu0 0.0
    %593 = vmatpush2.msra.mxu0 0.0
    %594 = vmatprep.subr.mxu0 0.0
    %595 = vmatpush2.msra.mxu0 0.0
    %596 = vmatprep.mubr.f32.mxu0 0.0
    %597 = vmatmul.mubr.f32.gmra.mxu0 %v509
    %v598 = vpop.f32.mrf.mxu0
    %v599 = vadd.f32 0.0, %v598
    %v600 = vpop.f32.mrf.mxu0
    %601 = vdwg.mxu0
    %v602 = vmul.f32 %v502, 0.9
    %v603 = vadd.f32 %v602, %v515
    %v604 = vadd.f32 %v603, %v599
    %v605 = vmul.f32 %v506, 0.9
    %v606 = vadd.f32 %v605, %v604
    %v607 = vmul.f32 %v509, 20.0
    %v608 = vsub.f32 %v606, %v607
    %vm609 = vcmp.gt.f32.partialorder %v608, 20.0
    %v610 = vsel %vm609, 1, 0
    %v611 = vcvt.s32.f32 %v610
    %s612 = scalar_lea.vmem [#allocation10], 24
    %613 = vst [vmem:[%s612] sm:$0xff] %v611
    %614 = vst [vmem:[#allocation3 + $0x3] sm:$0x1] %v611
    %615 = vst [vmem:[#allocation4 + $0x3] sm:$0x1] %v509
    %s616 = scalar_lea.vmem [#allocation2], 32
    %v617 = vld [vmem:[%s616] sm:$0xff]
    %v618 = vld [vmem:[#allocation5] sm:$0xff]
    %v619 = vld [vmem:[#allocation5 + $0x8] sm:$0xff]
    %v620 = vld [vmem:[#allocation5 + $0x10] sm:$0xff]
    %v621 = vld [vmem:[#allocation5 + $0x18] sm:$0xff]
    %v622 = vld [vmem:[#allocation5 + $0x20] sm:$0xff]
    %v623 = vld [vmem:[#allocation5 + $0x28] sm:$0xff]
    %v624 = vld [vmem:[#allocation5 + $0x30] sm:$0xff]
    %v625 = vld [vmem:[#allocation5 + $0x38] sm:$0xff]
    %v626 = vld [vmem:[#allocation5 + $0x40] sm:$0xff]
    %v627 = vld [vmem:[#allocation5 + $0x48] sm:$0xff]
    %v628 = vld [vmem:[#allocation5 + $0x50] sm:$0xff]
    %v629 = vld [vmem:[#allocation5 + $0x58] sm:$0xff]
    %v630 = vld [vmem:[#allocation5 + $0x60] sm:$0xff]
    %v631 = vld [vmem:[#allocation5 + $0x68] sm:$0xff]
    %v632 = vld [vmem:[#allocation5 + $0x70] sm:$0xff]
    %v633 = vld [vmem:[#allocation5 + $0x78] sm:$0xff]
    %634 = vmatprep.subr.mxu0 0.0
    %635 = vmatpush1.msra.mxu0 %v633
    %636 = vmatprep.subr.mxu0 0.0
    %637 = vmatpush1.msra.mxu0 %v632
    %638 = vmatprep.subr.mxu0 0.0
    %639 = vmatpush1.msra.mxu0 %v631
    %640 = vmatprep.subr.mxu0 0.0
    %641 = vmatpush1.msra.mxu0 %v630
    %642 = vmatprep.subr.mxu0 0.0
    %643 = vmatpush1.msra.mxu0 %v629
    %644 = vmatprep.subr.mxu0 0.0
    %645 = vmatpush1.msra.mxu0 %v628
    %646 = vmatprep.subr.mxu0 0.0
    %647 = vmatpush1.msra.mxu0 %v627
    %648 = vmatprep.subr.mxu0 0.0
    %649 = vmatpush1.msra.mxu0 %v626
    %650 = vmatprep.subr.mxu0 0.0
    %651 = vmatpush1.msra.mxu0 %v625
    %652 = vmatprep.subr.mxu0 0.0
    %653 = vmatpush1.msra.mxu0 %v624
    %654 = vmatprep.subr.mxu0 0.0
    %655 = vmatpush1.msra.mxu0 %v623
    %656 = vmatprep.subr.mxu0 0.0
    %657 = vmatpush1.msra.mxu0 %v622
    %658 = vmatprep.subr.mxu0 0.0
    %659 = vmatpush1.msra.mxu0 %v621
    %660 = vmatprep.subr.mxu0 0.0
    %661 = vmatpush1.msra.mxu0 %v620
    %662 = vmatprep.subr.mxu0 0.0
    %663 = vmatpush1.msra.mxu0 %v619
    %664 = vmatprep.subr.mxu0 0.0
    %665 = vmatpush1.msra.mxu0 %v618
    %666 = vmatprep.subr.mxu0 0.0
    %667 = vmatpush2.msra.mxu0 0.0
    %668 = vmatprep.subr.mxu0 0.0
    %669 = vmatpush2.msra.mxu0 0.0
    %670 = vmatprep.subr.mxu0 0.0
    %671 = vmatpush2.msra.mxu0 0.0
    %672 = vmatprep.subr.mxu0 0.0
    %673 = vmatpush2.msra.mxu0 0.0
    %674 = vmatprep.subr.mxu0 0.0
    %675 = vmatpush2.msra.mxu0 0.0
    %676 = vmatprep.subr.mxu0 0.0
    %677 = vmatpush2.msra.mxu0 0.0
    %678 = vmatprep.subr.mxu0 0.0
    %679 = vmatpush2.msra.mxu0 0.0
    %680 = vmatprep.subr.mxu0 0.0
    %681 = vmatpush2.msra.mxu0 0.0
    %682 = vmatprep.subr.mxu0 0.0
    %683 = vmatpush2.msra.mxu0 0.0
    %684 = vmatprep.subr.mxu0 0.0
    %685 = vmatpush2.msra.mxu0 0.0
    %686 = vmatprep.subr.mxu0 0.0
    %687 = vmatpush2.msra.mxu0 0.0
    %688 = vmatprep.subr.mxu0 0.0
    %689 = vmatpush2.msra.mxu0 0.0
    %690 = vmatprep.subr.mxu0 0.0
    %691 = vmatpush2.msra.mxu0 0.0
    %692 = vmatprep.subr.mxu0 0.0
    %693 = vmatpush2.msra.mxu0 0.0
    %694 = vmatprep.subr.mxu0 0.0
    %695 = vmatpush2.msra.mxu0 0.0
    %696 = vmatprep.subr.mxu0 0.0
    %697 = vmatpush2.msra.mxu0 0.0
    %698 = vmatprep.mubr.f32.mxu0 0.0
    %699 = vmatmul.mubr.f32.gmra.mxu0 %v611
    %v700 = vpop.f32.mrf.mxu0
    %v701 = vadd.f32 0.0, %v700
    %v702 = vpop.f32.mrf.mxu0
    %703 = vdwg.mxu0
    %v704 = vmul.f32 %v604, 0.9
    %v705 = vadd.f32 %v704, %v617
    %v706 = vadd.f32 %v705, %v701
    %v707 = vmul.f32 %v608, 0.9
    %v708 = vadd.f32 %v707, %v706
    %v709 = vmul.f32 %v611, 20.0
    %v710 = vsub.f32 %v708, %v709
    %vm711 = vcmp.gt.f32.partialorder %v710, 20.0
    %v712 = vsel %vm711, 1, 0
    %v713 = vcvt.s32.f32 %v712
    %s714 = scalar_lea.vmem [#allocation10], 32
    %715 = vst [vmem:[%s714] sm:$0xff] %v713
    %716 = vst [vmem:[#allocation3 + $0x4] sm:$0x1] %v713
    %717 = vst [vmem:[#allocation4 + $0x4] sm:$0x1] %v611
    %s718 = scalar_lea.vmem [#allocation2], 40
    %v719 = vld [vmem:[%s718] sm:$0xff]
    %v720 = vld [vmem:[#allocation5] sm:$0xff]
    %v721 = vld [vmem:[#allocation5 + $0x8] sm:$0xff]
    %v722 = vld [vmem:[#allocation5 + $0x10] sm:$0xff]
    %v723 = vld [vmem:[#allocation5 + $0x18] sm:$0xff]
    %v724 = vld [vmem:[#allocation5 + $0x20] sm:$0xff]
    %v725 = vld [vmem:[#allocation5 + $0x28] sm:$0xff]
    %v726 = vld [vmem:[#allocation5 + $0x30] sm:$0xff]
    %v727 = vld [vmem:[#allocation5 + $0x38] sm:$0xff]
    %v728 = vld [vmem:[#allocation5 + $0x40] sm:$0xff]
    %v729 = vld [vmem:[#allocation5 + $0x48] sm:$0xff]
    %v730 = vld [vmem:[#allocation5 + $0x50] sm:$0xff]
    %v731 = vld [vmem:[#allocation5 + $0x58] sm:$0xff]
    %v732 = vld [vmem:[#allocation5 + $0x60] sm:$0xff]
    %v733 = vld [vmem:[#allocation5 + $0x68] sm:$0xff]
    %v734 = vld [vmem:[#allocation5 + $0x70] sm:$0xff]
    %v735 = vld [vmem:[#allocation5 + $0x78] sm:$0xff]
    %736 = vmatprep.subr.mxu0 0.0
    %737 = vmatpush1.msra.mxu0 %v735
    %738 = vmatprep.subr.mxu0 0.0
    %739 = vmatpush1.msra.mxu0 %v734
    %740 = vmatprep.subr.mxu0 0.0
    %741 = vmatpush1.msra.mxu0 %v733
    %742 = vmatprep.subr.mxu0 0.0
    %743 = vmatpush1.msra.mxu0 %v732
    %744 = vmatprep.subr.mxu0 0.0
    %745 = vmatpush1.msra.mxu0 %v731
    %746 = vmatprep.subr.mxu0 0.0
    %747 = vmatpush1.msra.mxu0 %v730
    %748 = vmatprep.subr.mxu0 0.0
    %749 = vmatpush1.msra.mxu0 %v729
    %750 = vmatprep.subr.mxu0 0.0
    %751 = vmatpush1.msra.mxu0 %v728
    %752 = vmatprep.subr.mxu0 0.0
    %753 = vmatpush1.msra.mxu0 %v727
    %754 = vmatprep.subr.mxu0 0.0
    %755 = vmatpush1.msra.mxu0 %v726
    %756 = vmatprep.subr.mxu0 0.0
    %757 = vmatpush1.msra.mxu0 %v725
    %758 = vmatprep.subr.mxu0 0.0
    %759 = vmatpush1.msra.mxu0 %v724
    %760 = vmatprep.subr.mxu0 0.0
    %761 = vmatpush1.msra.mxu0 %v723
    %762 = vmatprep.subr.mxu0 0.0
    %763 = vmatpush1.msra.mxu0 %v722
    %764 = vmatprep.subr.mxu0 0.0
    %765 = vmatpush1.msra.mxu0 %v721
    %766 = vmatprep.subr.mxu0 0.0
    %767 = vmatpush1.msra.mxu0 %v720
    %768 = vmatprep.subr.mxu0 0.0
    %769 = vmatpush2.msra.mxu0 0.0
    %770 = vmatprep.subr.mxu0 0.0
    %771 = vmatpush2.msra.mxu0 0.0
    %772 = vmatprep.subr.mxu0 0.0
    %773 = vmatpush2.msra.mxu0 0.0
    %774 = vmatprep.subr.mxu0 0.0
    %775 = vmatpush2.msra.mxu0 0.0
    %776 = vmatprep.subr.mxu0 0.0
    %777 = vmatpush2.msra.mxu0 0.0
    %778 = vmatprep.subr.mxu0 0.0
    %779 = vmatpush2.msra.mxu0 0.0
    %780 = vmatprep.subr.mxu0 0.0
    %781 = vmatpush2.msra.mxu0 0.0
    %782 = vmatprep.subr.mxu0 0.0
    %783 = vmatpush2.msra.mxu0 0.0
    %784 = vmatprep.subr.mxu0 0.0
    %785 = vmatpush2.msra.mxu0 0.0
    %786 = vmatprep.subr.mxu0 0.0
    %787 = vmatpush2.msra.mxu0 0.0
    %788 = vmatprep.subr.mxu0 0.0
    %789 = vmatpush2.msra.mxu0 0.0
    %790 = vmatprep.subr.mxu0 0.0
    %791 = vmatpush2.msra.mxu0 0.0
    %792 = vmatprep.subr.mxu0 0.0
    %793 = vmatpush2.msra.mxu0 0.0
    %794 = vmatprep.subr.mxu0 0.0
    %795 = vmatpush2.msra.mxu0 0.0
    %796 = vmatprep.subr.mxu0 0.0
    %797 = vmatpush2.msra.mxu0 0.0
    %798 = vmatprep.subr.mxu0 0.0
    %799 = vmatpush2.msra.mxu0 0.0
    %800 = vmatprep.mubr.f32.mxu0 0.0
    %801 = vmatmul.mubr.f32.gmra.mxu0 %v713
    %v802 = vpop.f32.mrf.mxu0
    %v803 = vadd.f32 0.0, %v802
    %v804 = vpop.f32.mrf.mxu0
    %805 = vdwg.mxu0
    %v806 = vmul.f32 %v706, 0.9
    %v807 = vadd.f32 %v806, %v719
    %v808 = vadd.f32 %v807, %v803
    %v809 = vmul.f32 %v710, 0.9
    %v810 = vadd.f32 %v809, %v808
    %v811 = vmul.f32 %v713, 20.0
    %v812 = vsub.f32 %v810, %v811
    %vm813 = vcmp.gt.f32.partialorder %v812, 20.0
    %v814 = vsel %vm813, 1, 0
    %v815 = vcvt.s32.f32 %v814
    %s816 = scalar_lea.vmem [#allocation10], 40
    %817 = vst [vmem:[%s816] sm:$0xff] %v815
    %818 = vst [vmem:[#allocation3 + $0x5] sm:$0x1] %v815
    %819 = vst [vmem:[#allocation4 + $0x5] sm:$0x1] %v713
    %s820 = scalar_lea.vmem [#allocation2], 48
    %v821 = vld [vmem:[%s820] sm:$0xff]
    %v822 = vld [vmem:[#allocation5] sm:$0xff]
    %v823 = vld [vmem:[#allocation5 + $0x8] sm:$0xff]
    %v824 = vld [vmem:[#allocation5 + $0x10] sm:$0xff]
    %v825 = vld [vmem:[#allocation5 + $0x18] sm:$0xff]
    %v826 = vld [vmem:[#allocation5 + $0x20] sm:$0xff]
    %v827 = vld [vmem:[#allocation5 + $0x28] sm:$0xff]
    %v828 = vld [vmem:[#allocation5 + $0x30] sm:$0xff]
    %v829 = vld [vmem:[#allocation5 + $0x38] sm:$0xff]
    %v830 = vld [vmem:[#allocation5 + $0x40] sm:$0xff]
    %v831 = vld [vmem:[#allocation5 + $0x48] sm:$0xff]
    %v832 = vld [vmem:[#allocation5 + $0x50] sm:$0xff]
    %v833 = vld [vmem:[#allocation5 + $0x58] sm:$0xff]
    %v834 = vld [vmem:[#allocation5 + $0x60] sm:$0xff]
    %v835 = vld [vmem:[#allocation5 + $0x68] sm:$0xff]
    %v836 = vld [vmem:[#allocation5 + $0x70] sm:$0xff]
    %v837 = vld [vmem:[#allocation5 + $0x78] sm:$0xff]
    %838 = vmatprep.subr.mxu0 0.0
    %839 = vmatpush1.msra.mxu0 %v837
    %840 = vmatprep.subr.mxu0 0.0
    %841 = vmatpush1.msra.mxu0 %v836
    %842 = vmatprep.subr.mxu0 0.0
    %843 = vmatpush1.msra.mxu0 %v835
    %844 = vmatprep.subr.mxu0 0.0
    %845 = vmatpush1.msra.mxu0 %v834
    %846 = vmatprep.subr.mxu0 0.0
    %847 = vmatpush1.msra.mxu0 %v833
    %848 = vmatprep.subr.mxu0 0.0
    %849 = vmatpush1.msra.mxu0 %v832
    %850 = vmatprep.subr.mxu0 0.0
    %851 = vmatpush1.msra.mxu0 %v831
    %852 = vmatprep.subr.mxu0 0.0
    %853 = vmatpush1.msra.mxu0 %v830
    %854 = vmatprep.subr.mxu0 0.0
    %855 = vmatpush1.msra.mxu0 %v829
    %856 = vmatprep.subr.mxu0 0.0
    %857 = vmatpush1.msra.mxu0 %v828
    %858 = vmatprep.subr.mxu0 0.0
    %859 = vmatpush1.msra.mxu0 %v827
    %860 = vmatprep.subr.mxu0 0.0
    %861 = vmatpush1.msra.mxu0 %v826
    %862 = vmatprep.subr.mxu0 0.0
    %863 = vmatpush1.msra.mxu0 %v825
    %864 = vmatprep.subr.mxu0 0.0
    %865 = vmatpush1.msra.mxu0 %v824
    %866 = vmatprep.subr.mxu0 0.0
    %867 = vmatpush1.msra.mxu0 %v823
    %868 = vmatprep.subr.mxu0 0.0
    %869 = vmatpush1.msra.mxu0 %v822
    %870 = vmatprep.subr.mxu0 0.0
    %871 = vmatpush2.msra.mxu0 0.0
    %872 = vmatprep.subr.mxu0 0.0
    %873 = vmatpush2.msra.mxu0 0.0
    %874 = vmatprep.subr.mxu0 0.0
    %875 = vmatpush2.msra.mxu0 0.0
    %876 = vmatprep.subr.mxu0 0.0
    %877 = vmatpush2.msra.mxu0 0.0
    %878 = vmatprep.subr.mxu0 0.0
    %879 = vmatpush2.msra.mxu0 0.0
    %880 = vmatprep.subr.mxu0 0.0
    %881 = vmatpush2.msra.mxu0 0.0
    %882 = vmatprep.subr.mxu0 0.0
    %883 = vmatpush2.msra.mxu0 0.0
    %884 = vmatprep.subr.mxu0 0.0
    %885 = vmatpush2.msra.mxu0 0.0
    %886 = vmatprep.subr.mxu0 0.0
    %887 = vmatpush2.msra.mxu0 0.0
    %888 = vmatprep.subr.mxu0 0.0
    %889 = vmatpush2.msra.mxu0 0.0
    %890 = vmatprep.subr.mxu0 0.0
    %891 = vmatpush2.msra.mxu0 0.0
    %892 = vmatprep.subr.mxu0 0.0
    %893 = vmatpush2.msra.mxu0 0.0
    %894 = vmatprep.subr.mxu0 0.0
    %895 = vmatpush2.msra.mxu0 0.0
    %896 = vmatprep.subr.mxu0 0.0
    %897 = vmatpush2.msra.mxu0 0.0
    %898 = vmatprep.subr.mxu0 0.0
    %899 = vmatpush2.msra.mxu0 0.0
    %900 = vmatprep.subr.mxu0 0.0
    %901 = vmatpush2.msra.mxu0 0.0
    %902 = vmatprep.mubr.f32.mxu0 0.0
    %903 = vmatmul.mubr.f32.gmra.mxu0 %v815
    %v904 = vpop.f32.mrf.mxu0
    %v905 = vadd.f32 0.0, %v904
    %v906 = vpop.f32.mrf.mxu0
    %907 = vdwg.mxu0
    %v908 = vmul.f32 %v808, 0.9
    %v909 = vadd.f32 %v908, %v821
    %v910 = vadd.f32 %v909, %v905
    %v911 = vmul.f32 %v812, 0.9
    %v912 = vadd.f32 %v911, %v910
    %v913 = vmul.f32 %v815, 20.0
    %v914 = vsub.f32 %v912, %v913
    %vm915 = vcmp.gt.f32.partialorder %v914, 20.0
    %v916 = vsel %vm915, 1, 0
    %v917 = vcvt.s32.f32 %v916
    %s918 = scalar_lea.vmem [#allocation10], 48
    %919 = vst [vmem:[%s918] sm:$0xff] %v917
    %920 = vst [vmem:[#allocation3 + $0x6] sm:$0x1] %v917
    %921 = vst [vmem:[#allocation4 + $0x6] sm:$0x1] %v815
    %s922 = scalar_lea.vmem [#allocation2], 56
    %v923 = vld [vmem:[%s922] sm:$0xff]
    %v924 = vld [vmem:[#allocation5] sm:$0xff]
    %v925 = vld [vmem:[#allocation5 + $0x8] sm:$0xff]
    %v926 = vld [vmem:[#allocation5 + $0x10] sm:$0xff]
    %v927 = vld [vmem:[#allocation5 + $0x18] sm:$0xff]
    %v928 = vld [vmem:[#allocation5 + $0x20] sm:$0xff]
    %v929 = vld [vmem:[#allocation5 + $0x28] sm:$0xff]
    %v930 = vld [vmem:[#allocation5 + $0x30] sm:$0xff]
    %v931 = vld [vmem:[#allocation5 + $0x38] sm:$0xff]
    %v932 = vld [vmem:[#allocation5 + $0x40] sm:$0xff]
    %v933 = vld [vmem:[#allocation5 + $0x48] sm:$0xff]
    %v934 = vld [vmem:[#allocation5 + $0x50] sm:$0xff]
    %v935 = vld [vmem:[#allocation5 + $0x58] sm:$0xff]
    %v936 = vld [vmem:[#allocation5 + $0x60] sm:$0xff]
    %v937 = vld [vmem:[#allocation5 + $0x68] sm:$0xff]
    %v938 = vld [vmem:[#allocation5 + $0x70] sm:$0xff]
    %v939 = vld [vmem:[#allocation5 + $0x78] sm:$0xff]
    %940 = vmatprep.subr.mxu0 0.0
    %941 = vmatpush1.msra.mxu0 %v939
    %942 = vmatprep.subr.mxu0 0.0
    %943 = vmatpush1.msra.mxu0 %v938
    %944 = vmatprep.subr.mxu0 0.0
    %945 = vmatpush1.msra.mxu0 %v937
    %946 = vmatprep.subr.mxu0 0.0
    %947 = vmatpush1.msra.mxu0 %v936
    %948 = vmatprep.subr.mxu0 0.0
    %949 = vmatpush1.msra.mxu0 %v935
    %950 = vmatprep.subr.mxu0 0.0
    %951 = vmatpush1.msra.mxu0 %v934
    %952 = vmatprep.subr.mxu0 0.0
    %953 = vmatpush1.msra.mxu0 %v933
    %954 = vmatprep.subr.mxu0 0.0
    %955 = vmatpush1.msra.mxu0 %v932
    %956 = vmatprep.subr.mxu0 0.0
    %957 = vmatpush1.msra.mxu0 %v931
    %958 = vmatprep.subr.mxu0 0.0
    %959 = vmatpush1.msra.mxu0 %v930
    %960 = vmatprep.subr.mxu0 0.0
    %961 = vmatpush1.msra.mxu0 %v929
    %962 = vmatprep.subr.mxu0 0.0
    %963 = vmatpush1.msra.mxu0 %v928
    %964 = vmatprep.subr.mxu0 0.0
    %965 = vmatpush1.msra.mxu0 %v927
    %966 = vmatprep.subr.mxu0 0.0
    %967 = vmatpush1.msra.mxu0 %v926
    %968 = vmatprep.subr.mxu0 0.0
    %969 = vmatpush1.msra.mxu0 %v925
    %970 = vmatprep.subr.mxu0 0.0
    %971 = vmatpush1.msra.mxu0 %v924
    %972 = vmatprep.subr.mxu0 0.0
    %973 = vmatpush2.msra.mxu0 0.0
    %974 = vmatprep.subr.mxu0 0.0
    %975 = vmatpush2.msra.mxu0 0.0
    %976 = vmatprep.subr.mxu0 0.0
    %977 = vmatpush2.msra.mxu0 0.0
    %978 = vmatprep.subr.mxu0 0.0
    %979 = vmatpush2.msra.mxu0 0.0
    %980 = vmatprep.subr.mxu0 0.0
    %981 = vmatpush2.msra.mxu0 0.0
    %982 = vmatprep.subr.mxu0 0.0
    %983 = vmatpush2.msra.mxu0 0.0
    %984 = vmatprep.subr.mxu0 0.0
    %985 = vmatpush2.msra.mxu0 0.0
    %986 = vmatprep.subr.mxu0 0.0
    %987 = vmatpush2.msra.mxu0 0.0
    %988 = vmatprep.subr.mxu0 0.0
    %989 = vmatpush2.msra.mxu0 0.0
    %990 = vmatprep.subr.mxu0 0.0
    %991 = vmatpush2.msra.mxu0 0.0
    %992 = vmatprep.subr.mxu0 0.0
    %993 = vmatpush2.msra.mxu0 0.0
    %994 = vmatprep.subr.mxu0 0.0
    %995 = vmatpush2.msra.mxu0 0.0
    %996 = vmatprep.subr.mxu0 0.0
    %997 = vmatpush2.msra.mxu0 0.0
    %998 = vmatprep.subr.mxu0 0.0
    %999 = vmatpush2.msra.mxu0 0.0
    %1000 = vmatprep.subr.mxu0 0.0
    %1001 = vmatpush2.msra.mxu0 0.0
    %1002 = vmatprep.subr.mxu0 0.0
    %1003 = vmatpush2.msra.mxu0 0.0
    %1004 = vmatprep.mubr.f32.mxu0 0.0
    %1005 = vmatmul.mubr.f32.gmra.mxu0 %v917
    %v1006 = vpop.f32.mrf.mxu0
    %v1007 = vadd.f32 0.0, %v1006
    %v1008 = vpop.f32.mrf.mxu0
    %1009 = vdwg.mxu0
    %v1010 = vmul.f32 %v910, 0.9
    %v1011 = vadd.f32 %v1010, %v923
    %v1012 = vadd.f32 %v1011, %v1007
    %v1013 = vmul.f32 %v914, 0.9
    %v1014 = vadd.f32 %v1013, %v1012
    %v1015 = vmul.f32 %v917, 20.0
    %v1016 = vsub.f32 %v1014, %v1015
    %vm1017 = vcmp.gt.f32.partialorder %v1016, 20.0
    %v1018 = vsel %vm1017, 1, 0
    %v1019 = vcvt.s32.f32 %v1018
    %s1020 = scalar_lea.vmem [#allocation10], 56
    %1021 = vst [vmem:[%s1020] sm:$0xff] %v1019
    %1022 = vst [vmem:[#allocation3 + $0x7] sm:$0x1] %v1019
    %1023 = vst [vmem:[#allocation4 + $0x7] sm:$0x1] %v917
    %v1024 = vld [vmem:[#allocation3] sm:$0xff]
    %v1025 = vld [vmem:[#allocation4] sm:$0xff]
    %1026 = vxpose.xlu0.b32.start [1/16] %v1024, 128
    %1027 = vxpose.xlu0.b32.cont [2/16] 0.0, 128
    %1028 = vxpose.xlu0.b32.cont [3/16] 0.0, 128
    %1029 = vxpose.xlu0.b32.cont [4/16] 0.0, 128
    %1030 = vxpose.xlu0.b32.cont [5/16] 0.0, 128
    %1031 = vxpose.xlu0.b32.cont [6/16] 0.0, 128
    %1032 = vxpose.xlu0.b32.cont [7/16] 0.0, 128
    %1033 = vxpose.xlu0.b32.cont [8/16] 0.0, 128
    %1034 = vxpose.xlu0.b32.cont [9/16] 0.0, 128
    %1035 = vxpose.xlu0.b32.cont [10/16] 0.0, 128
    %1036 = vxpose.xlu0.b32.cont [11/16] 0.0, 128
    %1037 = vxpose.xlu0.b32.cont [12/16] 0.0, 128
    %1038 = vxpose.xlu0.b32.cont [13/16] 0.0, 128
    %1039 = vxpose.xlu0.b32.cont [14/16] 0.0, 128
    %1040 = vxpose.xlu0.b32.cont [15/16] 0.0, 128
    %1041 = vxpose.xlu0.b32.end [16/16] 0.0, 128
    %v1042 = vpop.trf.xlu0
    %v1043 = vpop.trf.xlu0
    %v1044 = vpop.trf.xlu0
    %v1045 = vpop.trf.xlu0
    %v1046 = vpop.trf.xlu0
    %v1047 = vpop.trf.xlu0
    %v1048 = vpop.trf.xlu0
    %v1049 = vpop.trf.xlu0
    %v1050 = vpop.trf.xlu0
    %v1051 = vpop.trf.xlu0
    %v1052 = vpop.trf.xlu0
    %v1053 = vpop.trf.xlu0
    %v1054 = vpop.trf.xlu0
    %v1055 = vpop.trf.xlu0
    %v1056 = vpop.trf.xlu0
    %v1057 = vpop.trf.xlu0
    %vm1058 = vcmask 64512
    %v1060 = vsel %vm1058, %v1042, 0
    %v1063 = vsel %vm1058, %v1043, 0
    %v1066 = vsel %vm1058, %v1044, 0
    %v1069 = vsel %vm1058, %v1045, 0
    %v1072 = vsel %vm1058, %v1046, 0
    %v1075 = vsel %vm1058, %v1047, 0
    %v1078 = vsel %vm1058, %v1048, 0
    %v1081 = vsel %vm1058, %v1049, 0
    %v1084 = vsel %vm1058, %v1050, 0
    %v1087 = vsel %vm1058, %v1051, 0
    %v1090 = vsel %vm1058, %v1052, 0
    %v1093 = vsel %vm1058, %v1053, 0
    %v1096 = vsel %vm1058, %v1054, 0
    %v1099 = vsel %vm1058, %v1055, 0
    %v1102 = vsel %vm1058, %v1056, 0
    %v1105 = vsel %vm1058, %v1057, 0
    %1107 = vmatprep.subr.mxu0 0.0
    %1108 = vmatpush1.msra.mxu0 0.0
    %1109 = vmatprep.subr.mxu0 0.0
    %1110 = vmatpush1.msra.mxu0 0.0
    %1111 = vmatprep.subr.mxu0 0.0
    %1112 = vmatpush1.msra.mxu0 0.0
    %1113 = vmatprep.subr.mxu0 0.0
    %1114 = vmatpush1.msra.mxu0 0.0
    %1115 = vmatprep.subr.mxu0 0.0
    %1116 = vmatpush1.msra.mxu0 0.0
    %1117 = vmatprep.subr.mxu0 0.0
    %1118 = vmatpush1.msra.mxu0 0.0
    %1119 = vmatprep.subr.mxu0 0.0
    %1120 = vmatpush1.msra.mxu0 0.0
    %1121 = vmatprep.subr.mxu0 0.0
    %1122 = vmatpush1.msra.mxu0 0.0
    %1123 = vmatprep.subr.mxu0 0.0
    %1124 = vmatpush1.msra.mxu0 0.0
    %1125 = vmatprep.subr.mxu0 0.0
    %1126 = vmatpush1.msra.mxu0 0.0
    %1127 = vmatprep.subr.mxu0 0.0
    %1128 = vmatpush1.msra.mxu0 0.0
    %1129 = vmatprep.subr.mxu0 0.0
    %1130 = vmatpush1.msra.mxu0 0.0
    %1131 = vmatprep.subr.mxu0 0.0
    %1132 = vmatpush1.msra.mxu0 0.0
    %1133 = vmatprep.subr.mxu0 0.0
    %1134 = vmatpush1.msra.mxu0 0.0
    %1135 = vmatprep.subr.mxu0 0.0
    %1136 = vmatpush1.msra.mxu0 0.0
    %1137 = vmatprep.subr.mxu0 0.0
    %1138 = vmatpush1.msra.mxu0 %v1025
    %1139 = vmatprep.subr.mxu0 0.0
    %1140 = vmatpush2.msra.mxu0 0.0
    %1141 = vmatprep.subr.mxu0 0.0
    %1142 = vmatpush2.msra.mxu0 0.0
    %1143 = vmatprep.subr.mxu0 0.0
    %1144 = vmatpush2.msra.mxu0 0.0
    %1145 = vmatprep.subr.mxu0 0.0
    %1146 = vmatpush2.msra.mxu0 0.0
    %1147 = vmatprep.subr.mxu0 0.0
    %1148 = vmatpush2.msra.mxu0 0.0
    %1149 = vmatprep.subr.mxu0 0.0
    %1150 = vmatpush2.msra.mxu0 0.0
    %1151 = vmatprep.subr.mxu0 0.0
    %1152 = vmatpush2.msra.mxu0 0.0
    %1153 = vmatprep.subr.mxu0 0.0
    %1154 = vmatpush2.msra.mxu0 0.0
    %1155 = vmatprep.subr.mxu0 0.0
    %1156 = vmatpush2.msra.mxu0 0.0
    %1157 = vmatprep.subr.mxu0 0.0
    %1158 = vmatpush2.msra.mxu0 0.0
    %1159 = vmatprep.subr.mxu0 0.0
    %1160 = vmatpush2.msra.mxu0 0.0
    %1161 = vmatprep.subr.mxu0 0.0
    %1162 = vmatpush2.msra.mxu0 0.0
    %1163 = vmatprep.subr.mxu0 0.0
    %1164 = vmatpush2.msra.mxu0 0.0
    %1165 = vmatprep.subr.mxu0 0.0
    %1166 = vmatpush2.msra.mxu0 0.0
    %1167 = vmatprep.subr.mxu0 0.0
    %1168 = vmatpush2.msra.mxu0 0.0
    %1169 = vmatprep.subr.mxu0 0.0
    %1170 = vmatpush2.msra.mxu0 0.0
    %1171 = vmatprep.mubr.f32.mxu0 0.0
    %1172 = vmatmul.mubr.f32.gmra.mxu0 %v1060
    %v1173 = vpop.f32.mrf.mxu0
    %v1174 = vadd.f32 0.0, %v1173
    %v1175 = vpop.f32.mrf.mxu0
    %1176 = vmatprep.mubr.f32.mxu0 0.0
    %1177 = vmatmul.mubr.f32.gmra.mxu0 %v1063
    %v1178 = vpop.f32.mrf.mxu0
    %v1179 = vadd.f32 0.0, %v1178
    %v1180 = vpop.f32.mrf.mxu0
    %1181 = vmatprep.mubr.f32.mxu0 0.0
    %1182 = vmatmul.mubr.f32.gmra.mxu0 %v1066
    %v1183 = vpop.f32.mrf.mxu0
    %v1184 = vadd.f32 0.0, %v1183
    %v1185 = vpop.f32.mrf.mxu0
    %1186 = vmatprep.mubr.f32.mxu0 0.0
    %1187 = vmatmul.mubr.f32.gmra.mxu0 %v1069
    %v1188 = vpop.f32.mrf.mxu0
    %v1189 = vadd.f32 0.0, %v1188
    %v1190 = vpop.f32.mrf.mxu0
    %1191 = vmatprep.mubr.f32.mxu0 0.0
    %1192 = vmatmul.mubr.f32.gmra.mxu0 %v1072
    %v1193 = vpop.f32.mrf.mxu0
    %v1194 = vadd.f32 0.0, %v1193
    %v1195 = vpop.f32.mrf.mxu0
    %1196 = vmatprep.mubr.f32.mxu0 0.0
    %1197 = vmatmul.mubr.f32.gmra.mxu0 %v1075
    %v1198 = vpop.f32.mrf.mxu0
    %v1199 = vadd.f32 0.0, %v1198
    %v1200 = vpop.f32.mrf.mxu0
    %1201 = vmatprep.mubr.f32.mxu0 0.0
    %1202 = vmatmul.mubr.f32.gmra.mxu0 %v1078
    %v1203 = vpop.f32.mrf.mxu0
    %v1204 = vadd.f32 0.0, %v1203
    %v1205 = vpop.f32.mrf.mxu0
    %1206 = vmatprep.mubr.f32.mxu0 0.0
    %1207 = vmatmul.mubr.f32.gmra.mxu0 %v1081
    %v1208 = vpop.f32.mrf.mxu0
    %v1209 = vadd.f32 0.0, %v1208
    %v1210 = vpop.f32.mrf.mxu0
    %1211 = vmatprep.mubr.f32.mxu0 0.0
    %1212 = vmatmul.mubr.f32.gmra.mxu0 %v1084
    %v1213 = vpop.f32.mrf.mxu0
    %v1214 = vadd.f32 0.0, %v1213
    %v1215 = vpop.f32.mrf.mxu0
    %1216 = vmatprep.mubr.f32.mxu0 0.0
    %1217 = vmatmul.mubr.f32.gmra.mxu0 %v1087
    %v1218 = vpop.f32.mrf.mxu0
    %v1219 = vadd.f32 0.0, %v1218
    %v1220 = vpop.f32.mrf.mxu0
    %1221 = vmatprep.mubr.f32.mxu0 0.0
    %1222 = vmatmul.mubr.f32.gmra.mxu0 %v1090
    %v1223 = vpop.f32.mrf.mxu0
    %v1224 = vadd.f32 0.0, %v1223
    %v1225 = vpop.f32.mrf.mxu0
    %1226 = vmatprep.mubr.f32.mxu0 0.0
    %1227 = vmatmul.mubr.f32.gmra.mxu0 %v1093
    %v1228 = vpop.f32.mrf.mxu0
    %v1229 = vadd.f32 0.0, %v1228
    %v1230 = vpop.f32.mrf.mxu0
    %1231 = vmatprep.mubr.f32.mxu0 0.0
    %1232 = vmatmul.mubr.f32.gmra.mxu0 %v1096
    %v1233 = vpop.f32.mrf.mxu0
    %v1234 = vadd.f32 0.0, %v1233
    %v1235 = vpop.f32.mrf.mxu0
    %1236 = vmatprep.mubr.f32.mxu0 0.0
    %1237 = vmatmul.mubr.f32.gmra.mxu0 %v1099
    %v1238 = vpop.f32.mrf.mxu0
    %v1239 = vadd.f32 0.0, %v1238
    %v1240 = vpop.f32.mrf.mxu0
    %1241 = vmatprep.mubr.f32.mxu0 0.0
    %1242 = vmatmul.mubr.f32.gmra.mxu0 %v1102
    %v1243 = vpop.f32.mrf.mxu0
    %v1244 = vadd.f32 0.0, %v1243
    %v1245 = vpop.f32.mrf.mxu0
    %1246 = vmatprep.mubr.f32.mxu0 0.0
    %1247 = vmatmul.mubr.f32.gmra.mxu0 %v1105
    %v1248 = vpop.f32.mrf.mxu0
    %v1249 = vadd.f32 0.0, %v1248
    %v1250 = vpop.f32.mrf.mxu0
    %1251 = vdwg.mxu0
    %v1252 = vld [vmem:[#allocation8] sm:$0xff]
    %v1253 = vld [vmem:[#allocation8 + $0x8] sm:$0xff]
    %v1254 = vld [vmem:[#allocation8 + $0x10] sm:$0xff]
    %v1255 = vld [vmem:[#allocation8 + $0x18] sm:$0xff]
    %v1256 = vld [vmem:[#allocation8 + $0x20] sm:$0xff]
    %v1257 = vld [vmem:[#allocation8 + $0x28] sm:$0xff]
    %v1258 = vld [vmem:[#allocation8 + $0x30] sm:$0xff]
    %v1259 = vld [vmem:[#allocation8 + $0x38] sm:$0xff]
    %v1260 = vld [vmem:[#allocation8 + $0x40] sm:$0xff]
    %v1261 = vld [vmem:[#allocation8 + $0x48] sm:$0xff]
    %v1262 = vld [vmem:[#allocation8 + $0x50] sm:$0xff]
    %v1263 = vld [vmem:[#allocation8 + $0x58] sm:$0xff]
    %v1264 = vld [vmem:[#allocation8 + $0x60] sm:$0xff]
    %v1265 = vld [vmem:[#allocation8 + $0x68] sm:$0xff]
    %v1266 = vld [vmem:[#allocation8 + $0x70] sm:$0xff]
    %v1267 = vld [vmem:[#allocation8 + $0x78] sm:$0xff]
    %vm1268 = vcmp.gt.f32.partialorder %v1174, 0.5
    %vm1269 = vcmp.gt.f32.partialorder %v1179, 0.5
    %vm1270 = vcmp.gt.f32.partialorder %v1184, 0.5
    %vm1271 = vcmp.gt.f32.partialorder %v1189, 0.5
    %vm1272 = vcmp.gt.f32.partialorder %v1194, 0.5
    %vm1273 = vcmp.gt.f32.partialorder %v1199, 0.5
    %vm1274 = vcmp.gt.f32.partialorder %v1204, 0.5
    %vm1275 = vcmp.gt.f32.partialorder %v1209, 0.5
    %vm1276 = vcmp.gt.f32.partialorder %v1214, 0.5
    %vm1277 = vcmp.gt.f32.partialorder %v1219, 0.5
    %vm1278 = vcmp.gt.f32.partialorder %v1224, 0.5
    %vm1279 = vcmp.gt.f32.partialorder %v1229, 0.5
    %vm1280 = vcmp.gt.f32.partialorder %v1234, 0.5
    %vm1281 = vcmp.gt.f32.partialorder %v1239, 0.5
    %vm1282 = vcmp.gt.f32.partialorder %v1244, 0.5
    %vm1283 = vcmp.gt.f32.partialorder %v1249, 0.5
    %v1284 = vmul.f32 %v1174, -0.000100041674
    %v1285 = vmul.f32 %v1179, -0.000100041674
    %v1286 = vmul.f32 %v1184, -0.000100041674
    %v1287 = vmul.f32 %v1189, -0.000100041674
    %v1288 = vmul.f32 %v1194, -0.000100041674
    %v1289 = vmul.f32 %v1199, -0.000100041674
    %v1290 = vmul.f32 %v1204, -0.000100041674
    %v1291 = vmul.f32 %v1209, -0.000100041674
    %v1292 = vmul.f32 %v1214, -0.000100041674
    %v1293 = vmul.f32 %v1219, -0.000100041674
    %v1294 = vmul.f32 %v1224, -0.000100041674
    %v1295 = vmul.f32 %v1229, -0.000100041674
    %v1296 = vmul.f32 %v1234, -0.000100041674
    %v1297 = vmul.f32 %v1239, -0.000100041674
    %v1298 = vmul.f32 %v1244, -0.000100041674
    %v1299 = vmul.f32 %v1249, -0.000100041674
    %v1300 = vadd.f32 %v1252, %v1284
    %v1301 = vadd.f32 %v1253, %v1285
    %v1302 = vadd.f32 %v1254, %v1286
    %v1303 = vadd.f32 %v1255, %v1287
    %v1304 = vadd.f32 %v1256, %v1288
    %v1305 = vadd.f32 %v1257, %v1289
    %v1306 = vadd.f32 %v1258, %v1290
    %v1307 = vadd.f32 %v1259, %v1291
    %v1308 = vadd.f32 %v1260, %v1292
    %v1309 = vadd.f32 %v1261, %v1293
    %v1310 = vadd.f32 %v1262, %v1294
    %v1311 = vadd.f32 %v1263, %v1295
    %v1312 = vadd.f32 %v1264, %v1296
    %v1313 = vadd.f32 %v1265, %v1297
    %v1314 = vadd.f32 %v1266, %v1298
    %v1315 = vadd.f32 %v1267, %v1299
    %v1316 = vmax.f32 %v1300, -1.0
    %v1317 = vmax.f32 %v1301, -1.0
    %v1318 = vmax.f32 %v1302, -1.0
    %v1319 = vmax.f32 %v1303, -1.0
    %v1320 = vmax.f32 %v1304, -1.0
    %v1321 = vmax.f32 %v1305, -1.0
    %v1322 = vmax.f32 %v1306, -1.0
    %v1323 = vmax.f32 %v1307, -1.0
    %v1324 = vmax.f32 %v1308, -1.0
    %v1325 = vmax.f32 %v1309, -1.0
    %v1326 = vmax.f32 %v1310, -1.0
    %v1327 = vmax.f32 %v1311, -1.0
    %v1328 = vmax.f32 %v1312, -1.0
    %v1329 = vmax.f32 %v1313, -1.0
    %v1330 = vmax.f32 %v1314, -1.0
    %v1331 = vmax.f32 %v1315, -1.0
    %v1332 = vmin.f32 %v1316, 1.0
    %v1333 = vmin.f32 %v1317, 1.0
    %v1334 = vmin.f32 %v1318, 1.0
    %v1335 = vmin.f32 %v1319, 1.0
    %v1336 = vmin.f32 %v1320, 1.0
    %v1337 = vmin.f32 %v1321, 1.0
    %v1338 = vmin.f32 %v1322, 1.0
    %v1339 = vmin.f32 %v1323, 1.0
    %v1340 = vmin.f32 %v1324, 1.0
    %v1341 = vmin.f32 %v1325, 1.0
    %v1342 = vmin.f32 %v1326, 1.0
    %v1343 = vmin.f32 %v1327, 1.0
    %v1344 = vmin.f32 %v1328, 1.0
    %v1345 = vmin.f32 %v1329, 1.0
    %v1346 = vmin.f32 %v1330, 1.0
    %v1347 = vmin.f32 %v1331, 1.0
    %v1348 = vsel %vm1268, %v1332, %v1252
    %v1349 = vsel %vm1269, %v1333, %v1253
    %v1350 = vsel %vm1270, %v1334, %v1254
    %v1351 = vsel %vm1271, %v1335, %v1255
    %v1352 = vsel %vm1272, %v1336, %v1256
    %v1353 = vsel %vm1273, %v1337, %v1257
    %v1354 = vsel %vm1274, %v1338, %v1258
    %v1355 = vsel %vm1275, %v1339, %v1259
    %v1356 = vsel %vm1276, %v1340, %v1260
    %v1357 = vsel %vm1277, %v1341, %v1261
    %v1358 = vsel %vm1278, %v1342, %v1262
    %v1359 = vsel %vm1279, %v1343, %v1263
    %v1360 = vsel %vm1280, %v1344, %v1264
    %v1361 = vsel %vm1281, %v1345, %v1265
    %v1362 = vsel %vm1282, %v1346, %v1266
    %v1363 = vsel %vm1283, %v1347, %v1267
    %1364 = vst [vmem:[#allocation11] sm:$0xff] %v1348
    %1365 = vst [vmem:[#allocation11 + $0x8] sm:$0xff] %v1349
    %1366 = vst [vmem:[#allocation11 + $0x10] sm:$0xff] %v1350
    %1367 = vst [vmem:[#allocation11 + $0x18] sm:$0xff] %v1351
    %1368 = vst [vmem:[#allocation11 + $0x20] sm:$0xff] %v1352
    %1369 = vst [vmem:[#allocation11 + $0x28] sm:$0xff] %v1353
    %1370 = vst [vmem:[#allocation11 + $0x30] sm:$0xff] %v1354
    %1371 = vst [vmem:[#allocation11 + $0x38] sm:$0xff] %v1355
    %1372 = vst [vmem:[#allocation11 + $0x40] sm:$0xff] %v1356
    %1373 = vst [vmem:[#allocation11 + $0x48] sm:$0xff] %v1357
    %1374 = vst [vmem:[#allocation11 + $0x50] sm:$0xff] %v1358
    %1375 = vst [vmem:[#allocation11 + $0x58] sm:$0xff] %v1359
    %1376 = vst [vmem:[#allocation11 + $0x60] sm:$0xff] %v1360
    %1377 = vst [vmem:[#allocation11 + $0x68] sm:$0xff] %v1361
    %1378 = vst [vmem:[#allocation11 + $0x70] sm:$0xff] %v1362
    %1379 = vst [vmem:[#allocation11 + $0x78] sm:$0xff] %v1363
    // Predicated region
    $region30: #{tpu_custom_call.1} parent=1 // pred_check
      _
    $region31: #{tpu_custom_call.1} parent=1 // pred_check_branch
      %1381 = sbr.rel (0) target = $region33
    $region32: #{tpu_custom_call.1} parent=1 // pred_region
      %s1383 = ssub.s32 1024, 1024
      %1384 = vsyncadd [#allocation7], %s1383
      %s1385 = sshll.u32 [#allocation10], 4
      %s1386 = int_to_ptr.vmem [resolvable:$true] %s1385
      %1391 = dma.vmem_to_hbm [thread:$0]  %s1386, 1024, %s5, [#allocation7], 128, 128, 8
    $region33: #{tpu_custom_call.1} parent=1 // pred_fallthru
      _
    // Predicated region
    $region34: #{tpu_custom_call.1} parent=1 // pred_check
      _
    $region35: #{tpu_custom_call.1} parent=1 // pred_check_branch
      %1393 = sbr.rel (0) target = $region37
    $region36: #{tpu_custom_call.1} parent=1 // pred_region
      %s1395 = ssub.s32 2048, 2048
      %1396 = vsyncadd [#allocation12], %s1395
      %s1397 = sshll.u32 [#allocation11], 4
      %s1398 = int_to_ptr.vmem [resolvable:$true] %s1397
      %1403 = dma.vmem_to_hbm [thread:$0]  %s1398, 2048, %s6, [#allocation12], 128, 128, 8
    $region37: #{tpu_custom_call.1} parent=1 // pred_fallthru
      _
    // Predicated region
    $region38: #{tpu_custom_call.1} parent=1 // pred_check
      _
    $region39: #{tpu_custom_call.1} parent=1 // pred_check_branch
      %1405 = sbr.rel (0) target = $region41
    $region40: #{tpu_custom_call.1} parent=1 // pred_region
      %1406 = dma.done [#allocation7], 1024
    $region41: #{tpu_custom_call.1} parent=1 // pred_fallthru
      _
    // Predicated region
    $region42: #{tpu_custom_call.1} parent=1 // pred_check
      _
    $region43: #{tpu_custom_call.1} parent=1 // pred_check_branch
      %1408 = sbr.rel (0) target = $region45
    $region44: #{tpu_custom_call.1} parent=1 // pred_region
      %1409 = dma.done [#allocation12], 2048
    $region45: #{tpu_custom_call.1} parent=1 // pred_fallthru
      _
    %1410 = vsyncpa [#allocation6], 1
    %1411 = vsyncpa [#allocation9], 1
    %1412 = vsyncpa [#allocation7], 1
    %1413 = vsyncpa [#allocation12], 1

</llo_original>
